<compile_context>
chip_gen: v6e
topology: v6e:2x2x1
jax: 0.10.0
libtpu: 0.0.40
codegen_flags: <defaults>
</compile_context>

<pallas_src>
import numpy as np
import jax
import jax.numpy as jnp
from jax import lax
from jax.experimental import pallas as pl
from jax.experimental.pallas import tpu as pltpu


def _gelu(v):
    # tanh-form GELU: transcendental goes to the EUP slot instead of an erf
    # polynomial on the VPU (review item); |err| vs exact erf GELU < ~1e-3.
    c = 0.7978845608028654  # sqrt(2/pi)
    return 0.5 * v * (1.0 + jnp.tanh(c * (v + 0.044715 * v * v * v)))


def fno1d_kernel(x_ref, fc0wa_ref, hbias_ref, fbd_ref, wcat_ref, mask2_ref,
                 col_ref, ibdcat_ref, w0w_ref, w0b_ref, fc1w_ref, fc1b_ref,
                 fc2wt_ref, fc2b_ref, out_ref):
    f32 = jnp.float32
    bf16 = jnp.bfloat16
    MW = col_ref.shape[0]                      # modes * width

    # ---- fc0 (K=2) as VPU FMAs: a(x)*W[0] + (grid*W[1] + b) folded constant --
    a = x_ref[...]                                                 # (R, 1) f32
    h = a * fc0wa_ref[...] + hbias_ref[...]                        # (R, W) f32
    hb = h.astype(bf16)

    # ---- SpectralConv1d ----------------------------------------------------
    # truncated rfft: one block-diag-over-batch stacked (re, im) matmul
    xf = jnp.dot(fbd_ref[...], hb, preferred_element_type=f32)     # (Q, W)

    # mode mixing on the MXU: ONE wide matmul against [wr | wi] (fused),
    # constant 0/1 mode-selection mask, two lane-aligned collapse matmuls.
    p = jnp.dot(xf.astype(bf16), wcat_ref[...],
                preferred_element_type=f32)                        # (Q, 2*MW)
    p = p.astype(bf16) * mask2_ref[...]                            # mask is 0/1
    d1 = jnp.dot(p[:, :MW], col_ref[...], preferred_element_type=f32)  # (Q, W)
    d2 = jnp.dot(p[:, MW:], col_ref[...], preferred_element_type=f32)  # (Q, W)

    # truncated irfft (+ re/im cross terms) as ONE matmul on the row-stack
    dcat = jnp.concatenate([d1, d2], axis=0).astype(bf16)          # (2Q, W)
    x1 = jnp.dot(ibdcat_ref[...], dcat, preferred_element_type=f32)  # (R, W)

    # ---- w0: 1x1 Conv1d == pointwise channel matmul (batch folded in rows) --
    x2 = jnp.dot(hb, w0w_ref[...], preferred_element_type=f32) + w0b_ref[...]

    y = _gelu(x1 + x2)                                             # (R, W)
    z = _gelu(jnp.dot(y.astype(bf16), fc1w_ref[...],
                      preferred_element_type=f32) + fc1b_ref[...]) # (R, 128)

    # ---- fc2: contract z's LAST dim against fc2wt's LAST dim (no z.T),
    # producing a lane-dense (1, R) output row directly.
    out_row = lax.dot_general(
        fc2wt_ref[...], z.astype(bf16),
        dimension_numbers=(((1,), (1,)), ((), ())),
        preferred_element_type=f32) + fc2b_ref[...]                # (1, R)
    out_ref[0] = out_row


def _choose_tb(B, S, cap=32):
    """TB*S is the M dim of every pointwise matmul and the output lane width.
    Target >= 256 rows (v6e/v7x MXU fill) when the batch gives >= 2 grid steps
    (v7x: both TensorCores busy on the 'parallel' axis), else >= 128 rows; the
    batch is padded up to a whole number of blocks.  Cap TB so the
    block-diagonal DFT constants stay tiny."""
    tb128 = min(cap, max(1, -(-128 // S)))
    tb256 = min(cap, max(1, -(-256 // S)))
    if B >= 2 * tb256:
        return tb256
    if B >= 2 * tb128:
        return tb128
    return tb128


def fno1d_forward(x, params, modes, block_batch=None):
    B, S, _ = x.shape
    M = modes
    W = params["fc0_w"].shape[1]
    bf = jnp.bfloat16

    TB = block_batch if block_batch is not None else _choose_tb(B, S)
    nblk = -(-B // TB)                      # ceil-div; batch padded below
    Bp = nblk * TB
    R = TB * S                              # rows per block (>= 128)
    Q = 2 * M * TB                          # stacked (re,im) x modes x batch

    # ---------- trace-time constants ----------
    k = np.arange(M)[:, None]
    n = np.arange(S)[None, :]
    ang = 2.0 * np.pi * k * n / S
    frt = np.cos(ang)                       # (M, S)  Re of rfft matrix
    fit = -np.sin(ang)                      # (M, S)  Im of rfft matrix
    coef = np.full((M, 1), 2.0 / S)
    coef[0, 0] = 1.0 / S                    # DC term
    if S % 2 == 0 and M - 1 == S // 2:
        coef[M - 1, 0] = 1.0 / S            # Nyquist term
    grt = (coef * np.cos(ang)).T            # (S, M)
    git = (-coef * np.sin(ang)).T           # (S, M)

    # block-diagonal (over the TB batch rows of one block) forward DFT;
    # row order (mode, re/im, batch) — must match mask2 / ibdcat below.
    fst = np.stack([frt, fit], axis=1)                         # (M, 2, S)
    fbd = np.zeros((M, 2, TB, TB, S), np.float32)
    for b in range(TB):
        fbd[:, :, b, b, :] = fst
    fbd = fbd.reshape(Q, R)

    # inverse DFT (+ re/im cross terms), pre-concatenated so the irfft is a
    # single matmul against the row-stack [d1; d2].
    gst1 = np.stack([grt, git], axis=2)                        # applied to d1
    gst2 = np.stack([git, -grt], axis=2)                       # applied to d2
    ibd = np.zeros((TB, S, M, 2, TB), np.float32)
    ibd2 = np.zeros((TB, S, M, 2, TB), np.float32)
    for b in range(TB):
        ibd[b, :, :, :, b] = gst1
        ibd2[b, :, :, :, b] = gst2
    ibdcat = np.concatenate([ibd.reshape(R, Q), ibd2.reshape(R, Q)], axis=1)

    # mode-selection mask for the fused wide mode-mix matmul ([wr | wi] halves)
    mask = np.zeros((M, 2, TB, M, W), np.float32)
    for m in range(M):
        mask[m, :, :, m, :] = 1.0
    mask2 = np.tile(mask.reshape(Q, M * W), (1, 2))            # (Q, 2*M*W)
    collapse = np.tile(np.eye(W, dtype=np.float32), (M, 1))    # (M*W, W)

    # spectral weights: torch layout (in, out, modes) -> wide [wr | wi]
    wrw = jnp.transpose(params["spec_wr"], (0, 2, 1)).reshape(W, M * W)
    wiw = jnp.transpose(params["spec_wi"], (0, 2, 1)).reshape(W, M * W)
    wcat_b = jnp.concatenate([wrw, wiw], axis=1).astype(bf)    # (W, 2*M*W)

    # bf16 MXU operands (f32 accumulation in-kernel)
    fbd_b = jnp.asarray(fbd, bf)
    ibdcat_b = jnp.asarray(ibdcat, bf)
    mask2_b = jnp.asarray(mask2, bf)
    col_b = jnp.asarray(collapse, bf)
    w0w_b = params["w0_w"].astype(bf)
    fc1w_b = params["fc1_w"].astype(bf)
    fc2wt_b = params["fc2_w"].T.astype(bf)                     # (1, 128)

    # fc0: a-channel weight row; grid channel folded into a resident constant.
    gridv = jnp.linspace(0.0, 2.0 * np.pi, S, dtype=jnp.float32)
    grid_col = jnp.tile(gridv, TB).reshape(R, 1)
    fc0wa = params["fc0_w"][0:1, :]                            # (1, W)
    hbias = grid_col * params["fc0_w"][1:2, :] + params["fc0_b"]   # (R, W)

    # input: raw a(x) values only, padded to a whole number of batch blocks.
    # (Kept as a (R, 1) column: the fc0 FMA needs a per-row scalar; the 4*R-byte
    #  transfer is irrelevant — review item marked low priority.)
    x_col = x.reshape(B * S, 1)
    if Bp != B:
        x_col = jnp.concatenate(
            [x_col, jnp.zeros(((Bp - B) * S, 1), x_col.dtype)], axis=0)

    args = (x_col, fc0wa, hbias, fbd_b, wcat_b, mask2_b, col_b, ibdcat_b,
            w0w_b, params["w0_b"], fc1w_b, params["fc1_b"],
            fc2wt_b, params["fc2_b"])

    def const_spec(a):
        nd = a.ndim
        return pl.BlockSpec(a.shape, lambda i, _nd=nd: (0,) * _nd)

    in_specs = [pl.BlockSpec((R, 1), lambda i: (i, 0))]
    in_specs += [const_spec(a) for a in args[1:]]

    # VMEM budget from the actual footprint (x2 for default double-buffering)
    # + activation / compiler-scratch headroom; well under v7x's 64 MiB/TC.
    const_bytes = sum(int(np.prod(a.shape)) * a.dtype.itemsize for a in args)
    vmem_bytes = int(min(48 << 20, max(16 << 20, 2 * const_bytes + (12 << 20))))

    out = pl.pallas_call(
        fno1d_kernel,
        out_shape=jax.ShapeDtypeStruct((nblk, 1, R), jnp.float32),
        grid_spec=pltpu.PrefetchScalarGridSpec(
            num_scalar_prefetch=0,
            grid=(nblk,),
            in_specs=in_specs,
            out_specs=pl.BlockSpec((1, 1, R), lambda i: (i, 0, 0)),
        ),
        compiler_params=pltpu.CompilerParams(
            dimension_semantics=("parallel",),
            vmem_limit_bytes=vmem_bytes,
        ),
    )(*args)
    return out.reshape(Bp, S, 1)[:B]


def init_params(key, modes, width):
    # deterministic synthetic init (shapes from FNO1d.__init__); weights stored
    # pre-transposed as (in, out) where torch Linear/Conv1d stores (out, in).
    W = width
    ks = jax.random.split(key, 10)
    scale = 1.0 / (W * W)

    def u(k, shape, lim):
        return jax.random.uniform(k, shape, jnp.float32, -lim, lim)

    return {
        "fc0_w": u(ks[0], (2, W), 1.0 / np.sqrt(2.0)),
        "fc0_b": u(ks[1], (1, W), 1.0 / np.sqrt(2.0)),
        # TODO(synk): torch weights1 is complex128; TPU has no f64/complex, so
        # it is represented as a float32 (re, im) pair here.
        "spec_wr": scale * jax.random.uniform(ks[2], (W, W, modes), jnp.float32),
        "spec_wi": scale * jax.random.uniform(ks[3], (W, W, modes), jnp.float32),
        "w0_w": u(ks[4], (W, W), 1.0 / np.sqrt(W)),   # == conv.weight[:, :, 0].T
        "w0_b": u(ks[5], (1, W), 1.0 / np.sqrt(W)),
        "fc1_w": u(ks[6], (W, 128), 1.0 / np.sqrt(W)),
        "fc1_b": u(ks[7], (1, 128), 1.0 / np.sqrt(W)),
        "fc2_w": u(ks[8], (128, 1), 1.0 / np.sqrt(128.0)),
        "fc2_b": u(ks[9], (1, 1), 1.0 / np.sqrt(128.0)),
    }


def fno1d_reference(x, params, modes):
    # pure-JAX f32 reference (exact-erf GELU, complex FFT) mirroring the torch
    # forward, used for the correctness assert.
    B, S, _ = x.shape
    W = params["fc0_w"].shape[1]
    gridx = jnp.linspace(0.0, 2.0 * np.pi, S, dtype=jnp.float32).reshape(1, S, 1)
    xc = jnp.concatenate([x, jnp.broadcast_to(gridx, (B, S, 1))], axis=-1)
    h = xc @ params["fc0_w"] + params["fc0_b"]                    # (B,S,W)
    hp = jnp.transpose(h, (0, 2, 1))                              # (B,W,S)
    x_ft = jnp.fft.rfft(hp, axis=-1)
    w_c = (params["spec_wr"].astype(jnp.complex64)
           + 1j * params["spec_wi"].astype(jnp.complex64))
    out_ft = jnp.zeros((B, W, S // 2 + 1), jnp.complex64)
    out_ft = out_ft.at[:, :, :modes].set(
        jnp.einsum("bix,iox->box", x_ft[:, :, :modes], w_c))
    x1 = jnp.fft.irfft(out_ft, n=S, axis=-1)
    x2 = jnp.einsum("bis,io->bos", hp, params["w0_w"]) + params["w0_b"].reshape(1, W, 1)
    z = jax.nn.gelu(x1 + x2, approximate=False)
    z = jnp.transpose(z, (0, 2, 1))
    z = jax.nn.gelu(z @ params["fc1_w"] + params["fc1_b"], approximate=False)
    return z @ params["fc2_w"] + params["fc2_b"]


if __name__ == "__main__":
    modes, width = 4, 32
    key = jax.random.PRNGKey(0)
    kx, kx2, kp = jax.random.split(key, 3)
    params = init_params(kp, modes, width)

    # tolerance: bf16 MXU operands (f32 accumulate) + tanh-GELU vs the exact
    # f32/complex reference.
    RTOL, ATOL = 2e-2, 2e-2

    # primary small case: B=2, S=16 -> one padded 128-row block.
    x = jax.random.uniform(kx, (2, 16, 1), jnp.float32)           # (batch, x=s, c=1)
    out = jax.block_until_ready(fno1d_forward(x, params, modes))
    with jax.default_matmul_precision("highest"):
        ref = fno1d_reference(x, params, modes)
    np.testing.assert_allclose(np.asarray(out), np.asarray(ref), rtol=RTOL, atol=ATOL)

    # multi-block case: B=20 -> TB=8, 3 "parallel" grid steps (incl. padding).
    x2 = jax.random.uniform(kx2, (20, 16, 1), jnp.float32)
    out2 = jax.block_until_ready(fno1d_forward(x2, params, modes))
    with jax.default_matmul_precision("highest"):
        ref2 = fno1d_reference(x2, params, modes)
    np.testing.assert_allclose(np.asarray(out2), np.asarray(ref2), rtol=RTOL, atol=ATOL)

    print("KERNEL_OK")
</pallas_src>

<mosaic_0001>
module attributes {stable_mosaic.version = 11 : i64} {
  func.func @fno1d_kernel(%arg0: i32, %arg1: memref<128x1xf32, #tpu.memory_space<vmem>>, %arg2: memref<1x32xf32, #tpu.memory_space<vmem>>, %arg3: memref<128x32xf32, #tpu.memory_space<vmem>>, %arg4: memref<64x128xbf16, #tpu.memory_space<vmem>>, %arg5: memref<32x256xbf16, #tpu.memory_space<vmem>>, %arg6: memref<64x256xbf16, #tpu.memory_space<vmem>>, %arg7: memref<128x32xbf16, #tpu.memory_space<vmem>>, %arg8: memref<128x128xbf16, #tpu.memory_space<vmem>>, %arg9: memref<32x32xbf16, #tpu.memory_space<vmem>>, %arg10: memref<1x32xf32, #tpu.memory_space<vmem>>, %arg11: memref<32x128xbf16, #tpu.memory_space<vmem>>, %arg12: memref<1x128xf32, #tpu.memory_space<vmem>>, %arg13: memref<1x128xbf16, #tpu.memory_space<vmem>>, %arg14: memref<1x1xf32, #tpu.memory_space<vmem>>, %arg15: memref<1x1x128xf32, #tpu.memory_space<vmem>>) attributes {dimension_semantics = [#tpu.dimension_semantics<parallel>], iteration_bounds = array<i64: 1>, scalar_prefetch = 0 : i64, scratch_operands = 0 : i64, tpu.core_type = #tpu.core_type<tc>, window_params = [{transform_indices = @transform_0, window_bounds = array<i64: 128, 1>}, {pipeline_mode = #tpu.pipeline_mode<synchronous>, transform_indices = @transform_1, window_bounds = array<i64: 1, 32>}, {pipeline_mode = #tpu.pipeline_mode<synchronous>, transform_indices = @transform_2, window_bounds = array<i64: 128, 32>}, {pipeline_mode = #tpu.pipeline_mode<synchronous>, transform_indices = @transform_3, window_bounds = array<i64: 64, 128>}, {pipeline_mode = #tpu.pipeline_mode<synchronous>, transform_indices = @transform_4, window_bounds = array<i64: 32, 256>}, {pipeline_mode = #tpu.pipeline_mode<synchronous>, transform_indices = @transform_5, window_bounds = array<i64: 64, 256>}, {pipeline_mode = #tpu.pipeline_mode<synchronous>, transform_indices = @transform_6, window_bounds = array<i64: 128, 32>}, {pipeline_mode = #tpu.pipeline_mode<synchronous>, transform_indices = @transform_7, window_bounds = array<i64: 128, 128>}, {pipeline_mode = #tpu.pipeline_mode<synchronous>, transform_indices = @transform_8, window_bounds = array<i64: 32, 32>}, {pipeline_mode = #tpu.pipeline_mode<synchronous>, transform_indices = @transform_9, window_bounds = array<i64: 1, 32>}, {pipeline_mode = #tpu.pipeline_mode<synchronous>, transform_indices = @transform_10, window_bounds = array<i64: 32, 128>}, {pipeline_mode = #tpu.pipeline_mode<synchronous>, transform_indices = @transform_11, window_bounds = array<i64: 1, 128>}, {pipeline_mode = #tpu.pipeline_mode<synchronous>, transform_indices = @transform_12, window_bounds = array<i64: 1, 128>}, {pipeline_mode = #tpu.pipeline_mode<synchronous>, transform_indices = @transform_13, window_bounds = array<i64: 1, 1>}, {transform_indices = @transform_14, window_bounds = array<i64: 1, 1, 128>}]} {
    %c0 = arith.constant 0 : index
    %c0_0 = arith.constant 0 : index
    %0 = vector.load %arg1[%c0, %c0_0] : memref<128x1xf32, #tpu.memory_space<vmem>>, vector<128x1xf32>
    %c0_1 = arith.constant 0 : index
    %c0_2 = arith.constant 0 : index
    %1 = vector.load %arg2[%c0_1, %c0_2] : memref<1x32xf32, #tpu.memory_space<vmem>>, vector<1x32xf32>
    %2 = vector.broadcast %0 : vector<128x1xf32> to vector<128x32xf32>
    %3 = vector.broadcast %1 : vector<1x32xf32> to vector<128x32xf32>
    %4 = arith.mulf %2, %3 : vector<128x32xf32>
    %c0_3 = arith.constant 0 : index
    %c0_4 = arith.constant 0 : index
    %5 = vector.load %arg3[%c0_3, %c0_4] : memref<128x32xf32, #tpu.memory_space<vmem>>, vector<128x32xf32>
    %6 = arith.addf %4, %5 : vector<128x32xf32>
    %7 = arith.truncf %6 : vector<128x32xf32> to vector<128x32xbf16>
    %c0_5 = arith.constant 0 : index
    %c0_6 = arith.constant 0 : index
    %8 = vector.load %arg4[%c0_5, %c0_6] : memref<64x128xbf16, #tpu.memory_space<vmem>>, vector<64x128xbf16>
    %cst = arith.constant dense<0.000000e+00> : vector<64x32xf32>
    %9 = tpu.matmul %8, %7, %cst {dimension_numbers = #tpu.dot_dimension_numbers<[1], [0], [0], [1], [0, 0, 1, 1], [], []>} : vector<64x128xbf16>, vector<128x32xbf16>, vector<64x32xf32> -> vector<64x32xf32>
    %10 = arith.truncf %9 : vector<64x32xf32> to vector<64x32xbf16>
    %c0_7 = arith.constant 0 : index
    %c0_8 = arith.constant 0 : index
    %11 = vector.load %arg5[%c0_7, %c0_8] : memref<32x256xbf16, #tpu.memory_space<vmem>>, vector<32x256xbf16>
    %cst_9 = arith.constant dense<0.000000e+00> : vector<64x256xf32>
    %12 = tpu.matmul %10, %11, %cst_9 {dimension_numbers = #tpu.dot_dimension_numbers<[1], [0], [0], [1], [0, 0, 1, 1], [], []>} : vector<64x32xbf16>, vector<32x256xbf16>, vector<64x256xf32> -> vector<64x256xf32>
    %13 = arith.truncf %12 : vector<64x256xf32> to vector<64x256xbf16>
    %c0_10 = arith.constant 0 : index
    %c0_11 = arith.constant 0 : index
    %14 = vector.load %arg6[%c0_10, %c0_11] : memref<64x256xbf16, #tpu.memory_space<vmem>>, vector<64x256xbf16>
    %15 = arith.mulf %13, %14 : vector<64x256xbf16>
    %16 = vector.extract_strided_slice %15 {offsets = [0, 0], sizes = [64, 128], strides = [1, 1]} : vector<64x256xbf16> to vector<64x128xbf16>
    %c0_12 = arith.constant 0 : index
    %c0_13 = arith.constant 0 : index
    %17 = vector.load %arg7[%c0_12, %c0_13] : memref<128x32xbf16, #tpu.memory_space<vmem>>, vector<128x32xbf16>
    %cst_14 = arith.constant dense<0.000000e+00> : vector<64x32xf32>
    %18 = tpu.matmul %16, %17, %cst_14 {dimension_numbers = #tpu.dot_dimension_numbers<[1], [0], [0], [1], [0, 0, 1, 1], [], []>} : vector<64x128xbf16>, vector<128x32xbf16>, vector<64x32xf32> -> vector<64x32xf32>
    %19 = vector.extract_strided_slice %15 {offsets = [0, 128], sizes = [64, 128], strides = [1, 1]} : vector<64x256xbf16> to vector<64x128xbf16>
    %c0_15 = arith.constant 0 : index
    %c0_16 = arith.constant 0 : index
    %20 = vector.load %arg7[%c0_15, %c0_16] : memref<128x32xbf16, #tpu.memory_space<vmem>>, vector<128x32xbf16>
    %cst_17 = arith.constant dense<0.000000e+00> : vector<64x32xf32>
    %21 = tpu.matmul %19, %20, %cst_17 {dimension_numbers = #tpu.dot_dimension_numbers<[1], [0], [0], [1], [0, 0, 1, 1], [], []>} : vector<64x128xbf16>, vector<128x32xbf16>, vector<64x32xf32> -> vector<64x32xf32>
    %22 = tpu.concatenate %18, %21 in 0 : vector<64x32xf32>, vector<64x32xf32> -> vector<128x32xf32>
    %23 = arith.truncf %22 : vector<128x32xf32> to vector<128x32xbf16>
    %c0_18 = arith.constant 0 : index
    %c0_19 = arith.constant 0 : index
    %24 = vector.load %arg8[%c0_18, %c0_19] : memref<128x128xbf16, #tpu.memory_space<vmem>>, vector<128x128xbf16>
    %cst_20 = arith.constant dense<0.000000e+00> : vector<128x32xf32>
    %25 = tpu.matmul %24, %23, %cst_20 {dimension_numbers = #tpu.dot_dimension_numbers<[1], [0], [0], [1], [0, 0, 1, 1], [], []>} : vector<128x128xbf16>, vector<128x32xbf16>, vector<128x32xf32> -> vector<128x32xf32>
    %c0_21 = arith.constant 0 : index
    %c0_22 = arith.constant 0 : index
    %26 = vector.load %arg9[%c0_21, %c0_22] : memref<32x32xbf16, #tpu.memory_space<vmem>>, vector<32x32xbf16>
    %cst_23 = arith.constant dense<0.000000e+00> : vector<128x32xf32>
    %27 = tpu.matmul %7, %26, %cst_23 {dimension_numbers = #tpu.dot_dimension_numbers<[1], [0], [0], [1], [0, 0, 1, 1], [], []>} : vector<128x32xbf16>, vector<32x32xbf16>, vector<128x32xf32> -> vector<128x32xf32>
    %c0_24 = arith.constant 0 : index
    %c0_25 = arith.constant 0 : index
    %28 = vector.load %arg10[%c0_24, %c0_25] : memref<1x32xf32, #tpu.memory_space<vmem>>, vector<1x32xf32>
    %29 = vector.broadcast %28 : vector<1x32xf32> to vector<128x32xf32>
    %30 = arith.addf %27, %29 : vector<128x32xf32>
    %31 = arith.addf %25, %30 : vector<128x32xf32>
    %cst_26 = arith.constant 5.000000e-01 : f32
    %32 = vector.broadcast %cst_26 : f32 to vector<128x32xf32>
    %33 = arith.mulf %32, %31 : vector<128x32xf32>
    %cst_27 = arith.constant 4.471500e-02 : f32
    %34 = vector.broadcast %cst_27 : f32 to vector<128x32xf32>
    %35 = arith.mulf %34, %31 : vector<128x32xf32>
    %36 = arith.mulf %35, %31 : vector<128x32xf32>
    %37 = arith.mulf %36, %31 : vector<128x32xf32>
    %38 = arith.addf %31, %37 : vector<128x32xf32>
    %cst_28 = arith.constant 0.797884583 : f32
    %39 = vector.broadcast %cst_28 : f32 to vector<128x32xf32>
    %40 = arith.mulf %39, %38 : vector<128x32xf32>
    %41 = math.tanh %40 : vector<128x32xf32>
    %cst_29 = arith.constant 1.000000e+00 : f32
    %42 = vector.broadcast %cst_29 : f32 to vector<128x32xf32>
    %43 = arith.addf %42, %41 : vector<128x32xf32>
    %44 = arith.mulf %33, %43 : vector<128x32xf32>
    %45 = arith.truncf %44 : vector<128x32xf32> to vector<128x32xbf16>
    %c0_30 = arith.constant 0 : index
    %c0_31 = arith.constant 0 : index
    %46 = vector.load %arg11[%c0_30, %c0_31] : memref<32x128xbf16, #tpu.memory_space<vmem>>, vector<32x128xbf16>
    %cst_32 = arith.constant dense<0.000000e+00> : vector<128x128xf32>
    %47 = tpu.matmul %45, %46, %cst_32 {dimension_numbers = #tpu.dot_dimension_numbers<[1], [0], [0], [1], [0, 0, 1, 1], [], []>} : vector<128x32xbf16>, vector<32x128xbf16>, vector<128x128xf32> -> vector<128x128xf32>
    %c0_33 = arith.constant 0 : index
    %c0_34 = arith.constant 0 : index
    %48 = vector.load %arg12[%c0_33, %c0_34] : memref<1x128xf32, #tpu.memory_space<vmem>>, vector<1x128xf32>
    %49 = vector.broadcast %48 : vector<1x128xf32> to vector<128x128xf32>
    %50 = arith.addf %47, %49 : vector<128x128xf32>
    %cst_35 = arith.constant 5.000000e-01 : f32
    %51 = vector.broadcast %cst_35 : f32 to vector<128x128xf32>
    %52 = arith.mulf %51, %50 : vector<128x128xf32>
    %cst_36 = arith.constant 4.471500e-02 : f32
    %53 = vector.broadcast %cst_36 : f32 to vector<128x128xf32>
    %54 = arith.mulf %53, %50 : vector<128x128xf32>
    %55 = arith.mulf %54, %50 : vector<128x128xf32>
    %56 = arith.mulf %55, %50 : vector<128x128xf32>
    %57 = arith.addf %50, %56 : vector<128x128xf32>
    %cst_37 = arith.constant 0.797884583 : f32
    %58 = vector.broadcast %cst_37 : f32 to vector<128x128xf32>
    %59 = arith.mulf %58, %57 : vector<128x128xf32>
    %60 = math.tanh %59 : vector<128x128xf32>
    %cst_38 = arith.constant 1.000000e+00 : f32
    %61 = vector.broadcast %cst_38 : f32 to vector<128x128xf32>
    %62 = arith.addf %61, %60 : vector<128x128xf32>
    %63 = arith.mulf %52, %62 : vector<128x128xf32>
    %c0_39 = arith.constant 0 : index
    %c0_40 = arith.constant 0 : index
    %64 = vector.load %arg13[%c0_39, %c0_40] : memref<1x128xbf16, #tpu.memory_space<vmem>>, vector<1x128xbf16>
    %65 = arith.truncf %63 : vector<128x128xf32> to vector<128x128xbf16>
    %cst_41 = arith.constant dense<0.000000e+00> : vector<1x128xf32>
    %66 = tpu.matmul %64, %65, %cst_41 {dimension_numbers = #tpu.dot_dimension_numbers<[1], [1], [0], [0], [0, 0, 1, 0], [], []>} : vector<1x128xbf16>, vector<128x128xbf16>, vector<1x128xf32> -> vector<1x128xf32>
    %c0_42 = arith.constant 0 : index
    %c0_43 = arith.constant 0 : index
    %67 = vector.load %arg14[%c0_42, %c0_43] : memref<1x1xf32, #tpu.memory_space<vmem>>, vector<1x1xf32>
    %68 = vector.broadcast %67 : vector<1x1xf32> to vector<1x128xf32>
    %69 = arith.addf %66, %68 : vector<1x128xf32>
    %c0_44 = arith.constant 0 : index
    %c0_45 = arith.constant 0 : index
    %c0_46 = arith.constant 0 : index
    %70 = vector.load %arg15[%c0_44, %c0_45, %c0_46] : memref<1x1x128xf32, #tpu.memory_space<vmem>>, vector<1x1x128xf32>
    %71 = vector.shape_cast %70 : vector<1x1x128xf32> to vector<1x128xf32>
    %72 = vector.shape_cast %69 : vector<1x128xf32> to vector<1x1x128xf32>
    tpu.vector_store %arg15[%c0_44, %c0_45, %c0_46], %72 {strides = array<i32>} : memref<1x1x128xf32, #tpu.memory_space<vmem>>, vector<1x1x128xf32>,
    return
  }
  func.func @transform_0(%arg0: i32) -> (i32, i32) {
    %c0_i32 = arith.constant 0 : i32
    %c0_i32_0 = arith.constant 0 : i32
    return %arg0, %c0_i32 : i32, i32
  }
  func.func @transform_1(%arg0: i32) -> (i32, i32) {
    %c0_i32 = arith.constant 0 : i32
    %c0_i32_0 = arith.constant 0 : i32
    %c0_i32_1 = arith.constant 0 : i32
    return %c0_i32, %c0_i32_0 : i32, i32
  }
  func.func @transform_2(%arg0: i32) -> (i32, i32) {
    %c0_i32 = arith.constant 0 : i32
    %c0_i32_0 = arith.constant 0 : i32
    %c0_i32_1 = arith.constant 0 : i32
    return %c0_i32, %c0_i32_0 : i32, i32
  }
  func.func @transform_3(%arg0: i32) -> (i32, i32) {
    %c0_i32 = arith.constant 0 : i32
    %c0_i32_0 = arith.constant 0 : i32
    %c0_i32_1 = arith.constant 0 : i32
    return %c0_i32, %c0_i32_0 : i32, i32
  }
  func.func @transform_4(%arg0: i32) -> (i32, i32) {
    %c0_i32 = arith.constant 0 : i32
    %c0_i32_0 = arith.constant 0 : i32
    %c0_i32_1 = arith.constant 0 : i32
    return %c0_i32, %c0_i32_0 : i32, i32
  }
  func.func @transform_5(%arg0: i32) -> (i32, i32) {
    %c0_i32 = arith.constant 0 : i32
    %c0_i32_0 = arith.constant 0 : i32
    %c0_i32_1 = arith.constant 0 : i32
    return %c0_i32, %c0_i32_0 : i32, i32
  }
  func.func @transform_6(%arg0: i32) -> (i32, i32) {
    %c0_i32 = arith.constant 0 : i32
    %c0_i32_0 = arith.constant 0 : i32
    %c0_i32_1 = arith.constant 0 : i32
    return %c0_i32, %c0_i32_0 : i32, i32
  }
  func.func @transform_7(%arg0: i32) -> (i32, i32) {
    %c0_i32 = arith.constant 0 : i32
    %c0_i32_0 = arith.constant 0 : i32
    %c0_i32_1 = arith.constant 0 : i32
    return %c0_i32, %c0_i32_0 : i32, i32
  }
  func.func @transform_8(%arg0: i32) -> (i32, i32) {
    %c0_i32 = arith.constant 0 : i32
    %c0_i32_0 = arith.constant 0 : i32
    %c0_i32_1 = arith.constant 0 : i32
    return %c0_i32, %c0_i32_0 : i32, i32
  }
  func.func @transform_9(%arg0: i32) -> (i32, i32) {
    %c0_i32 = arith.constant 0 : i32
    %c0_i32_0 = arith.constant 0 : i32
    %c0_i32_1 = arith.constant 0 : i32
    return %c0_i32, %c0_i32_0 : i32, i32
  }
  func.func @transform_10(%arg0: i32) -> (i32, i32) {
    %c0_i32 = arith.constant 0 : i32
    %c0_i32_0 = arith.constant 0 : i32
    %c0_i32_1 = arith.constant 0 : i32
    return %c0_i32, %c0_i32_0 : i32, i32
  }
  func.func @transform_11(%arg0: i32) -> (i32, i32) {
    %c0_i32 = arith.constant 0 : i32
    %c0_i32_0 = arith.constant 0 : i32
    %c0_i32_1 = arith.constant 0 : i32
    return %c0_i32, %c0_i32_0 : i32, i32
  }
  func.func @transform_12(%arg0: i32) -> (i32, i32) {
    %c0_i32 = arith.constant 0 : i32
    %c0_i32_0 = arith.constant 0 : i32
    %c0_i32_1 = arith.constant 0 : i32
    return %c0_i32, %c0_i32_0 : i32, i32
  }
  func.func @transform_13(%arg0: i32) -> (i32, i32) {
    %c0_i32 = arith.constant 0 : i32
    %c0_i32_0 = arith.constant 0 : i32
    %c0_i32_1 = arith.constant 0 : i32
    return %c0_i32, %c0_i32_0 : i32, i32
  }
  func.func @transform_14(%arg0: i32) -> (i32, i32, i32) {
    %c0_i32 = arith.constant 0 : i32
    %c0_i32_0 = arith.constant 0 : i32
    %c0_i32_1 = arith.constant 0 : i32
    return %arg0, %c0_i32, %c0_i32_0 : i32, i32, i32
  }
}

</mosaic_0001>

<llo_original>
// kernel: tpu_custom_call.1
$region0: #{tpu_custom_call.1}
  #allocation0 [shape = 'u32[]', space=smem, size = 0x4, offset = 0x4, fixed_abs, tag = 'smem constant byte address 0x4 - core index']
  #allocation1 [shape = 'u32[144,128]{1,0:T(1,128)}', space=vmem, size = 0x12000, scoped, tag = 'internal scratch']
  #allocation2 [shape = 'f32[1,1]{1,0:T(1,128)S(1)}', space=vmem, size = 0x200, scoped, tag = 'scoped memory for tpu_custom_call.1']
  %s0 = inlined_call_operand.vmem [shape: f32[128,1], index: 0, kind: input, shape index: {}]
  %s1 = inlined_call_operand.vmem [shape: f32[1,32], index: 1, kind: input, shape index: {}]
  %s2 = inlined_call_operand.vmem [shape: f32[128,32], index: 2, kind: input, shape index: {}]
  %s3 = inlined_call_operand.vmem [shape: bf16[64,128], index: 3, kind: input, shape index: {}]
  %s4 = inlined_call_operand.vmem [shape: bf16[32,256], index: 4, kind: input, shape index: {}]
  %s5 = inlined_call_operand.vmem [shape: bf16[64,256], index: 5, kind: input, shape index: {}]
  %s6 = inlined_call_operand.vmem [shape: bf16[128,32], index: 6, kind: input, shape index: {}]
  %s7 = inlined_call_operand.vmem [shape: bf16[128,128], index: 7, kind: input, shape index: {}]
  %s8 = inlined_call_operand.vmem [shape: bf16[32,32], index: 8, kind: input, shape index: {}]
  %s9 = inlined_call_operand.vmem [shape: f32[1,32], index: 9, kind: input, shape index: {}]
  %s10 = inlined_call_operand.vmem [shape: bf16[32,128], index: 10, kind: input, shape index: {}]
  %s11 = inlined_call_operand.vmem [shape: f32[1,128], index: 11, kind: input, shape index: {}]
  %s12 = inlined_call_operand.vmem [shape: bf16[1,128], index: 12, kind: input, shape index: {}]
  %s13 = inlined_call_operand.<no memory space> [shape: f32[1,1], index: 13, kind: input, shape index: {}]
  %s14 = inlined_call_operand.hbm [shape: f32[1,1,128], index: 14, kind: output, shape index: {}]
  %s15 = sld [smem:[#allocation0]]
  $region66: #{tpu_custom_call.1} parent=0
    _
  %s17 = ssub.s32 1, %s15
  %s18 = scalar_select 0, %s17, %s15
  %v19 = vstv %s13
  %20 = vst [vmem:[#allocation2] sm:$0x1] %v19
  $region1: #{tpu_custom_call.1} parent=0
    #allocation3 [shape = 'u8[512]{0}', space=vmem, size = 0x400, scoped, tag = 'output window, operand 0, single buffered']
    #allocation4 [shape = 's32[1]{0}', space=sflag, size = 0x4, scoped, tag = 'scoped memory for tpu_custom_call.1']
    %21 = vsyncpa [#allocation4], 0
    // Predicated region
    $region2: #{tpu_custom_call.1} parent=1 // pred_check
      _
    $region3: #{tpu_custom_call.1} parent=1 // pred_check_branch
      %23 = sbr.rel (0) target = $region5
    $region4: #{tpu_custom_call.1} parent=1 // pred_region
      _
    $region5: #{tpu_custom_call.1} parent=1 // pred_fallthru
      _
    // Predicated region
    $region6: #{tpu_custom_call.1} parent=1 // pred_check
      _
    $region7: #{tpu_custom_call.1} parent=1 // pred_check_branch
      %25 = sbr.rel (0) target = $region9
    $region8: #{tpu_custom_call.1} parent=1 // pred_region
      _
    $region9: #{tpu_custom_call.1} parent=1 // pred_fallthru
      _
    // Predicated region
    $region10: #{tpu_custom_call.1} parent=1 // pred_check
      _
    $region11: #{tpu_custom_call.1} parent=1 // pred_check_branch
      %27 = sbr.rel (0) target = $region13
    $region12: #{tpu_custom_call.1} parent=1 // pred_region
      _
    $region13: #{tpu_custom_call.1} parent=1 // pred_fallthru
      _
    // Predicated region
    $region14: #{tpu_custom_call.1} parent=1 // pred_check
      _
    $region15: #{tpu_custom_call.1} parent=1 // pred_check_branch
      %29 = sbr.rel (0) target = $region17
    $region16: #{tpu_custom_call.1} parent=1 // pred_region
      _
    $region17: #{tpu_custom_call.1} parent=1 // pred_fallthru
      _
    // Predicated region
    $region18: #{tpu_custom_call.1} parent=1 // pred_check
      _
    $region19: #{tpu_custom_call.1} parent=1 // pred_check_branch
      %31 = sbr.rel (0) target = $region21
    $region20: #{tpu_custom_call.1} parent=1 // pred_region
      _
    $region21: #{tpu_custom_call.1} parent=1 // pred_fallthru
      _
    // Predicated region
    $region22: #{tpu_custom_call.1} parent=1 // pred_check
      _
    $region23: #{tpu_custom_call.1} parent=1 // pred_check_branch
      %33 = sbr.rel (0) target = $region25
    $region24: #{tpu_custom_call.1} parent=1 // pred_region
      _
    $region25: #{tpu_custom_call.1} parent=1 // pred_fallthru
      _
    // Predicated region
    $region26: #{tpu_custom_call.1} parent=1 // pred_check
      _
    $region27: #{tpu_custom_call.1} parent=1 // pred_check_branch
      %35 = sbr.rel (0) target = $region29
    $region28: #{tpu_custom_call.1} parent=1 // pred_region
      _
    $region29: #{tpu_custom_call.1} parent=1 // pred_fallthru
      _
    // Predicated region
    $region30: #{tpu_custom_call.1} parent=1 // pred_check
      _
    $region31: #{tpu_custom_call.1} parent=1 // pred_check_branch
      %37 = sbr.rel (0) target = $region33
    $region32: #{tpu_custom_call.1} parent=1 // pred_region
      _
    $region33: #{tpu_custom_call.1} parent=1 // pred_fallthru
      _
    // Predicated region
    $region34: #{tpu_custom_call.1} parent=1 // pred_check
      _
    $region35: #{tpu_custom_call.1} parent=1 // pred_check_branch
      %39 = sbr.rel (0) target = $region37
    $region36: #{tpu_custom_call.1} parent=1 // pred_region
      _
    $region37: #{tpu_custom_call.1} parent=1 // pred_fallthru
      _
    // Predicated region
    $region38: #{tpu_custom_call.1} parent=1 // pred_check
      _
    $region39: #{tpu_custom_call.1} parent=1 // pred_check_branch
      %41 = sbr.rel (0) target = $region41
    $region40: #{tpu_custom_call.1} parent=1 // pred_region
      _
    $region41: #{tpu_custom_call.1} parent=1 // pred_fallthru
      _
    // Predicated region
    $region42: #{tpu_custom_call.1} parent=1 // pred_check
      _
    $region43: #{tpu_custom_call.1} parent=1 // pred_check_branch
      %43 = sbr.rel (0) target = $region45
    $region44: #{tpu_custom_call.1} parent=1 // pred_region
      _
    $region45: #{tpu_custom_call.1} parent=1 // pred_fallthru
      _
    // Predicated region
    $region46: #{tpu_custom_call.1} parent=1 // pred_check
      _
    $region47: #{tpu_custom_call.1} parent=1 // pred_check_branch
      %45 = sbr.rel (0) target = $region49
    $region48: #{tpu_custom_call.1} parent=1 // pred_region
      _
    $region49: #{tpu_custom_call.1} parent=1 // pred_fallthru
      _
    // Predicated region
    $region50: #{tpu_custom_call.1} parent=1 // pred_check
      _
    $region51: #{tpu_custom_call.1} parent=1 // pred_check_branch
      %47 = sbr.rel (0) target = $region53
    $region52: #{tpu_custom_call.1} parent=1 // pred_region
      _
    $region53: #{tpu_custom_call.1} parent=1 // pred_fallthru
      _
    // Predicated region
    $region54: #{tpu_custom_call.1} parent=1 // pred_check
      _
    $region55: #{tpu_custom_call.1} parent=1 // pred_check_branch
      %49 = sbr.rel (0) target = $region57
    $region56: #{tpu_custom_call.1} parent=1 // pred_region
      _
    $region57: #{tpu_custom_call.1} parent=1 // pred_fallthru
      _
    %v51 = vld [vmem:[%s0] sm:$0xff]
    %v52 = vld [vmem:[%s0 + $0x8] sm:$0xff]
    %v53 = vld [vmem:[%s0 + $0x10] sm:$0xff]
    %v54 = vld [vmem:[%s0 + $0x18] sm:$0xff]
    %v55 = vld [vmem:[%s0 + $0x20] sm:$0xff]
    %v56 = vld [vmem:[%s0 + $0x28] sm:$0xff]
    %v57 = vld [vmem:[%s0 + $0x30] sm:$0xff]
    %v58 = vld [vmem:[%s0 + $0x38] sm:$0xff]
    %v59 = vld [vmem:[%s0 + $0x40] sm:$0xff]
    %v60 = vld [vmem:[%s0 + $0x48] sm:$0xff]
    %v61 = vld [vmem:[%s0 + $0x50] sm:$0xff]
    %v62 = vld [vmem:[%s0 + $0x58] sm:$0xff]
    %v63 = vld [vmem:[%s0 + $0x60] sm:$0xff]
    %v64 = vld [vmem:[%s0 + $0x68] sm:$0xff]
    %v65 = vld [vmem:[%s0 + $0x70] sm:$0xff]
    %v66 = vld [vmem:[%s0 + $0x78] sm:$0xff]
    %v67 = vld [vmem:[%s1] sm:$0x1]
    %69 = vset.pattern.permute.xlu0 0
    %70 = vperm.xlu0 %69, %v51
    %v71 = vpop.permute.xlu0 %70
    %74 = vset.pattern.permute.xlu0 0
    %75 = vperm.xlu0 %74, %v52
    %v76 = vpop.permute.xlu0 %75
    %79 = vset.pattern.permute.xlu0 0
    %80 = vperm.xlu0 %79, %v53
    %v81 = vpop.permute.xlu0 %80
    %84 = vset.pattern.permute.xlu0 0
    %85 = vperm.xlu0 %84, %v54
    %v86 = vpop.permute.xlu0 %85
    %89 = vset.pattern.permute.xlu0 0
    %90 = vperm.xlu0 %89, %v55
    %v91 = vpop.permute.xlu0 %90
    %94 = vset.pattern.permute.xlu0 0
    %95 = vperm.xlu0 %94, %v56
    %v96 = vpop.permute.xlu0 %95
    %99 = vset.pattern.permute.xlu0 0
    %100 = vperm.xlu0 %99, %v57
    %v101 = vpop.permute.xlu0 %100
    %104 = vset.pattern.permute.xlu0 0
    %105 = vperm.xlu0 %104, %v58
    %v106 = vpop.permute.xlu0 %105
    %109 = vset.pattern.permute.xlu0 0
    %110 = vperm.xlu0 %109, %v59
    %v111 = vpop.permute.xlu0 %110
    %114 = vset.pattern.permute.xlu0 0
    %115 = vperm.xlu0 %114, %v60
    %v116 = vpop.permute.xlu0 %115
    %119 = vset.pattern.permute.xlu0 0
    %120 = vperm.xlu0 %119, %v61
    %v121 = vpop.permute.xlu0 %120
    %124 = vset.pattern.permute.xlu0 0
    %125 = vperm.xlu0 %124, %v62
    %v126 = vpop.permute.xlu0 %125
    %129 = vset.pattern.permute.xlu0 0
    %130 = vperm.xlu0 %129, %v63
    %v131 = vpop.permute.xlu0 %130
    %134 = vset.pattern.permute.xlu0 0
    %135 = vperm.xlu0 %134, %v64
    %v136 = vpop.permute.xlu0 %135
    %139 = vset.pattern.permute.xlu0 0
    %140 = vperm.xlu0 %139, %v65
    %v141 = vpop.permute.xlu0 %140
    %144 = vset.pattern.permute.xlu0 0
    %145 = vperm.xlu0 %144, %v66
    %v146 = vpop.permute.xlu0 %145
    %v149 = vlaneseq
    %v150 = vshrl.u32 %v149, 7
    %v151 = vsub.s32 0, %v150
    %v152 = vrot.slane %v67, %v151
    %v154 = vmul.f32 %v71, %v152
    %v155 = vmul.f32 %v76, %v152
    %v156 = vmul.f32 %v81, %v152
    %v157 = vmul.f32 %v86, %v152
    %v158 = vmul.f32 %v91, %v152
    %v159 = vmul.f32 %v96, %v152
    %v160 = vmul.f32 %v101, %v152
    %v161 = vmul.f32 %v106, %v152
    %v162 = vmul.f32 %v111, %v152
    %v163 = vmul.f32 %v116, %v152
    %v164 = vmul.f32 %v121, %v152
    %v165 = vmul.f32 %v126, %v152
    %v166 = vmul.f32 %v131, %v152
    %v167 = vmul.f32 %v136, %v152
    %v168 = vmul.f32 %v141, %v152
    %v169 = vmul.f32 %v146, %v152
    %v170 = vld [vmem:[%s2] sm:$0xff]
    %v171 = vld [vmem:[%s2 + $0x8] sm:$0xff]
    %v172 = vld [vmem:[%s2 + $0x10] sm:$0xff]
    %v173 = vld [vmem:[%s2 + $0x18] sm:$0xff]
    %v174 = vld [vmem:[%s2 + $0x20] sm:$0xff]
    %v175 = vld [vmem:[%s2 + $0x28] sm:$0xff]
    %v176 = vld [vmem:[%s2 + $0x30] sm:$0xff]
    %v177 = vld [vmem:[%s2 + $0x38] sm:$0xff]
    %v178 = vld [vmem:[%s2 + $0x40] sm:$0xff]
    %v179 = vld [vmem:[%s2 + $0x48] sm:$0xff]
    %v180 = vld [vmem:[%s2 + $0x50] sm:$0xff]
    %v181 = vld [vmem:[%s2 + $0x58] sm:$0xff]
    %v182 = vld [vmem:[%s2 + $0x60] sm:$0xff]
    %v183 = vld [vmem:[%s2 + $0x68] sm:$0xff]
    %v184 = vld [vmem:[%s2 + $0x70] sm:$0xff]
    %v185 = vld [vmem:[%s2 + $0x78] sm:$0xff]
    %v186 = vadd.f32 %v154, %v170
    %v187 = vadd.f32 %v155, %v171
    %v188 = vadd.f32 %v156, %v172
    %v189 = vadd.f32 %v157, %v173
    %v190 = vadd.f32 %v158, %v174
    %v191 = vadd.f32 %v159, %v175
    %v192 = vadd.f32 %v160, %v176
    %v193 = vadd.f32 %v161, %v177
    %v194 = vadd.f32 %v162, %v178
    %v195 = vadd.f32 %v163, %v179
    %v196 = vadd.f32 %v164, %v180
    %v197 = vadd.f32 %v165, %v181
    %v198 = vadd.f32 %v166, %v182
    %v199 = vadd.f32 %v167, %v183
    %v200 = vadd.f32 %v168, %v184
    %v201 = vadd.f32 %v169, %v185
    %v202 = vpack.c.bf16 %v187, %v186
    %v203 = vpack.c.bf16 %v189, %v188
    %v204 = vpack.c.bf16 %v191, %v190
    %v205 = vpack.c.bf16 %v193, %v192
    %v206 = vpack.c.bf16 %v195, %v194
    %v207 = vpack.c.bf16 %v197, %v196
    %v208 = vpack.c.bf16 %v199, %v198
    %v209 = vpack.c.bf16 %v201, %v200
    %v210 = vld [vmem:[%s3] sm:$0xf]
    %v211 = vld [vmem:[%s3 + $0x4] sm:$0xf]
    %v212 = vld [vmem:[%s3 + $0x8] sm:$0xf]
    %v213 = vld [vmem:[%s3 + $0xc] sm:$0xf]
    %v214 = vld [vmem:[%s3 + $0x10] sm:$0xf]
    %v215 = vld [vmem:[%s3 + $0x14] sm:$0xf]
    %v216 = vld [vmem:[%s3 + $0x18] sm:$0xf]
    %v217 = vld [vmem:[%s3 + $0x1c] sm:$0xf]
    %v226 = vunpack.c.l.b16 %v210
    %v227 = vunpack.c.l.b16 %v211
    %v228 = vunpack.c.l.b16 %v212
    %v229 = vunpack.c.l.b16 %v213
    %v230 = vunpack.c.l.b16 %v214
    %v231 = vunpack.c.l.b16 %v215
    %v232 = vunpack.c.l.b16 %v216
    %v233 = vunpack.c.l.b16 %v217
    %v234 = vpack.c.b16 %v227, %v226
    %v235 = vpack.c.b16 %v229, %v228
    %v236 = vpack.c.b16 %v231, %v230
    %v237 = vpack.c.b16 %v233, %v232
    %242 = vmatprep.subr.bf16.mxu0 0
    %243 = vmatpush1.bf16.msra.mxu0 %v209
    %244 = vmatprep.subr.bf16.mxu0 0
    %245 = vmatpush1.bf16.msra.mxu0 %v208
    %246 = vmatprep.subr.bf16.mxu0 0
    %247 = vmatpush1.bf16.msra.mxu0 %v207
    %248 = vmatprep.subr.bf16.mxu0 0
    %249 = vmatpush1.bf16.msra.mxu0 %v206
    %250 = vmatprep.subr.bf16.mxu0 0
    %251 = vmatpush1.bf16.msra.mxu0 %v205
    %252 = vmatprep.subr.bf16.mxu0 0
    %253 = vmatpush1.bf16.msra.mxu0 %v204
    %254 = vmatprep.subr.bf16.mxu0 0
    %255 = vmatpush1.bf16.msra.mxu0 %v203
    %256 = vmatprep.subr.bf16.mxu0 0
    %257 = vmatpush1.bf16.msra.mxu0 %v202
    %258 = vmatprep.subr.bf16.mxu0 0
    %259 = vmatpush2.bf16.msra.mxu0 0
    %260 = vmatprep.subr.bf16.mxu0 0
    %261 = vmatpush2.bf16.msra.mxu0 0
    %262 = vmatprep.subr.bf16.mxu0 0
    %263 = vmatpush2.bf16.msra.mxu0 0
    %264 = vmatprep.subr.bf16.mxu0 0
    %265 = vmatpush2.bf16.msra.mxu0 0
    %266 = vmatprep.subr.bf16.mxu0 0
    %267 = vmatpush2.bf16.msra.mxu0 0
    %268 = vmatprep.subr.bf16.mxu0 0
    %269 = vmatpush2.bf16.msra.mxu0 0
    %270 = vmatprep.subr.bf16.mxu0 0
    %271 = vmatpush2.bf16.msra.mxu0 0
    %272 = vmatprep.subr.bf16.mxu0 0
    %273 = vmatpush2.bf16.msra.mxu0 0
    %274 = vmatprep.mubr.bf16.mxu0 0
    %275 = vmatmul.mubr.bf16.gmra.mxu0 %v234
    %v276 = vpop.f32.mrf.mxu0
    %v277 = vadd.f32 0.0, %v276
    %v278 = vpop.f32.mrf.mxu0
    %v279 = vpop.f32.mrf.mxu0
    %v280 = vadd.f32 0.0, %v279
    %v281 = vpop.f32.mrf.mxu0
    %282 = vmatprep.mubr.bf16.mxu0 0
    %283 = vmatmul.mubr.bf16.gmra.mxu0 %v235
    %v284 = vpop.f32.mrf.mxu0
    %v285 = vadd.f32 0.0, %v284
    %v286 = vpop.f32.mrf.mxu0
    %v287 = vpop.f32.mrf.mxu0
    %v288 = vadd.f32 0.0, %v287
    %v289 = vpop.f32.mrf.mxu0
    %290 = vmatprep.mubr.bf16.mxu0 0
    %291 = vmatmul.mubr.bf16.gmra.mxu0 %v236
    %v292 = vpop.f32.mrf.mxu0
    %v293 = vadd.f32 0.0, %v292
    %v294 = vpop.f32.mrf.mxu0
    %v295 = vpop.f32.mrf.mxu0
    %v296 = vadd.f32 0.0, %v295
    %v297 = vpop.f32.mrf.mxu0
    %298 = vmatprep.mubr.bf16.mxu0 0
    %299 = vmatmul.mubr.bf16.gmra.mxu0 %v237
    %v300 = vpop.f32.mrf.mxu0
    %v301 = vadd.f32 0.0, %v300
    %v302 = vpop.f32.mrf.mxu0
    %v303 = vpop.f32.mrf.mxu0
    %v304 = vadd.f32 0.0, %v303
    %v305 = vpop.f32.mrf.mxu0
    %306 = vdwg.mxu0
    %v307 = vpack.c.bf16 %v280, %v277
    %v308 = vpack.c.bf16 %v288, %v285
    %v309 = vpack.c.bf16 %v296, %v293
    %v310 = vpack.c.bf16 %v304, %v301
    %v311 = vld [vmem:[%s4] sm:$0xff]
    %v312 = vld [vmem:[%s4 + $0x8] sm:$0xff]
    %v313 = vld [vmem:[%s4 + $0x10] sm:$0xff]
    %v314 = vld [vmem:[%s4 + $0x18] sm:$0xff]
    %v319 = vunpack.c.l.b16 %v311
    %v320 = vunpack.c.h.b16 %v311
    %v321 = vunpack.c.l.b16 %v312
    %v322 = vunpack.c.h.b16 %v312
    %v323 = vunpack.c.l.b16 %v313
    %v324 = vunpack.c.h.b16 %v313
    %v325 = vunpack.c.l.b16 %v314
    %v326 = vunpack.c.h.b16 %v314
    %v327 = vpack.c.b16 %v321, %v319
    %v328 = vpack.c.b16 %v322, %v320
    %v329 = vpack.c.b16 %v325, %v323
    %v330 = vpack.c.b16 %v326, %v324
    %vm335 = vcmask 261120
    %v337 = vsel %vm335, %v307, 0
    %v340 = vsel %vm335, %v308, 0
    %v343 = vsel %vm335, %v309, 0
    %v346 = vsel %vm335, %v310, 0
    %348 = vmatprep.subr.bf16.mxu0 0
    %349 = vmatpush1.bf16.msra.mxu0 0
    %350 = vmatprep.subr.bf16.mxu0 0
    %351 = vmatpush1.bf16.msra.mxu0 0
    %352 = vmatprep.subr.bf16.mxu0 0
    %353 = vmatpush1.bf16.msra.mxu0 0
    %354 = vmatprep.subr.bf16.mxu0 0
    %355 = vmatpush1.bf16.msra.mxu0 0
    %356 = vmatprep.subr.bf16.mxu0 0
    %357 = vmatpush1.bf16.msra.mxu0 0
    %358 = vmatprep.subr.bf16.mxu0 0
    %359 = vmatpush1.bf16.msra.mxu0 0
    %360 = vmatprep.subr.bf16.mxu0 %v330
    %361 = vmatpush1.bf16.msra.mxu0 %v329
    %362 = vmatprep.subr.bf16.mxu0 %v328
    %363 = vmatpush1.bf16.msra.mxu0 %v327
    %364 = vmatprep.subr.bf16.mxu0 0
    %365 = vmatpush2.bf16.msra.mxu0 0
    %366 = vmatprep.subr.bf16.mxu0 0
    %367 = vmatpush2.bf16.msra.mxu0 0
    %368 = vmatprep.subr.bf16.mxu0 0
    %369 = vmatpush2.bf16.msra.mxu0 0
    %370 = vmatprep.subr.bf16.mxu0 0
    %371 = vmatpush2.bf16.msra.mxu0 0
    %372 = vmatprep.subr.bf16.mxu0 0
    %373 = vmatpush2.bf16.msra.mxu0 0
    %374 = vmatprep.subr.bf16.mxu0 0
    %375 = vmatpush2.bf16.msra.mxu0 0
    %376 = vmatprep.subr.bf16.mxu0 0
    %377 = vmatpush2.bf16.msra.mxu0 0
    %378 = vmatprep.subr.bf16.mxu0 0
    %379 = vmatpush2.bf16.msra.mxu0 0
    %380 = vmatprep.mubr.bf16.mxu0 0
    %381 = vmatmul.mubr.bf16.gmra.mxu0 %v337
    %v382 = vpop.f32.mrf.mxu0
    %v383 = vadd.f32 0.0, %v382
    %v384 = vpop.f32.mrf.mxu0
    %v385 = vadd.f32 0.0, %v384
    %v386 = vpop.f32.mrf.mxu0
    %v387 = vadd.f32 0.0, %v386
    %v388 = vpop.f32.mrf.mxu0
    %v389 = vadd.f32 0.0, %v388
    %390 = vmatprep.mubr.bf16.mxu0 0
    %391 = vmatmul.mubr.bf16.gmra.mxu0 %v340
    %v392 = vpop.f32.mrf.mxu0
    %v393 = vadd.f32 0.0, %v392
    %v394 = vpop.f32.mrf.mxu0
    %v395 = vadd.f32 0.0, %v394
    %v396 = vpop.f32.mrf.mxu0
    %v397 = vadd.f32 0.0, %v396
    %v398 = vpop.f32.mrf.mxu0
    %v399 = vadd.f32 0.0, %v398
    %400 = vmatprep.mubr.bf16.mxu0 0
    %401 = vmatmul.mubr.bf16.gmra.mxu0 %v343
    %v402 = vpop.f32.mrf.mxu0
    %v403 = vadd.f32 0.0, %v402
    %v404 = vpop.f32.mrf.mxu0
    %v405 = vadd.f32 0.0, %v404
    %v406 = vpop.f32.mrf.mxu0
    %v407 = vadd.f32 0.0, %v406
    %v408 = vpop.f32.mrf.mxu0
    %v409 = vadd.f32 0.0, %v408
    %410 = vmatprep.mubr.bf16.mxu0 0
    %411 = vmatmul.mubr.bf16.gmra.mxu0 %v346
    %v412 = vpop.f32.mrf.mxu0
    %v413 = vadd.f32 0.0, %v412
    %v414 = vpop.f32.mrf.mxu0
    %v415 = vadd.f32 0.0, %v414
    %v416 = vpop.f32.mrf.mxu0
    %v417 = vadd.f32 0.0, %v416
    %v418 = vpop.f32.mrf.mxu0
    %v419 = vadd.f32 0.0, %v418
    %420 = vdwg.mxu0
    %v421 = vpack.c.bf16 %v387, %v383
    %v422 = vpack.c.bf16 %v389, %v385
    %v423 = vpack.c.bf16 %v397, %v393
    %v424 = vpack.c.bf16 %v399, %v395
    %v425 = vpack.c.bf16 %v407, %v403
    %v426 = vpack.c.bf16 %v409, %v405
    %v427 = vpack.c.bf16 %v417, %v413
    %v428 = vpack.c.bf16 %v419, %v415
    %v429 = vld [vmem:[%s5] sm:$0xff]
    %v430 = vld [vmem:[%s5 + $0x8] sm:$0xff]
    %v431 = vld [vmem:[%s5 + $0x10] sm:$0xff]
    %v432 = vld [vmem:[%s5 + $0x18] sm:$0xff]
    %v433 = vld [vmem:[%s5 + $0x20] sm:$0xff]
    %v434 = vld [vmem:[%s5 + $0x28] sm:$0xff]
    %v435 = vld [vmem:[%s5 + $0x30] sm:$0xff]
    %v436 = vld [vmem:[%s5 + $0x38] sm:$0xff]
    %v445 = vunpack.c.l.b16 %v429
    %v446 = vunpack.c.h.b16 %v429
    %v447 = vunpack.c.l.b16 %v430
    %v448 = vunpack.c.h.b16 %v430
    %v449 = vunpack.c.l.b16 %v431
    %v450 = vunpack.c.h.b16 %v431
    %v451 = vunpack.c.l.b16 %v432
    %v452 = vunpack.c.h.b16 %v432
    %v453 = vunpack.c.l.b16 %v433
    %v454 = vunpack.c.h.b16 %v433
    %v455 = vunpack.c.l.b16 %v434
    %v456 = vunpack.c.h.b16 %v434
    %v457 = vunpack.c.l.b16 %v435
    %v458 = vunpack.c.h.b16 %v435
    %v459 = vunpack.c.l.b16 %v436
    %v460 = vunpack.c.h.b16 %v436
    %v461 = vpack.c.b16 %v447, %v445
    %v462 = vpack.c.b16 %v448, %v446
    %v463 = vpack.c.b16 %v451, %v449
    %v464 = vpack.c.b16 %v452, %v450
    %v465 = vpack.c.b16 %v455, %v453
    %v466 = vpack.c.b16 %v456, %v454
    %v467 = vpack.c.b16 %v459, %v457
    %v468 = vpack.c.b16 %v460, %v458
    %v477 = vmul.bf16 %v421, %v461
    %v478 = vmul.bf16 %v422, %v462
    %v479 = vmul.bf16 %v423, %v463
    %v480 = vmul.bf16 %v424, %v464
    %v481 = vmul.bf16 %v425, %v465
    %v482 = vmul.bf16 %v426, %v466
    %v483 = vmul.bf16 %v427, %v467
    %v484 = vmul.bf16 %v428, %v468
    %v485 = vld [vmem:[%s6] sm:$0xf]
    %v486 = vld [vmem:[%s6 + $0x4] sm:$0xf]
    %v487 = vld [vmem:[%s6 + $0x8] sm:$0xf]
    %v488 = vld [vmem:[%s6 + $0xc] sm:$0xf]
    %v489 = vld [vmem:[%s6 + $0x10] sm:$0xf]
    %v490 = vld [vmem:[%s6 + $0x14] sm:$0xf]
    %v491 = vld [vmem:[%s6 + $0x18] sm:$0xf]
    %v492 = vld [vmem:[%s6 + $0x1c] sm:$0xf]
    %v493 = vld [vmem:[%s6 + $0x20] sm:$0xf]
    %v494 = vld [vmem:[%s6 + $0x24] sm:$0xf]
    %v495 = vld [vmem:[%s6 + $0x28] sm:$0xf]
    %v496 = vld [vmem:[%s6 + $0x2c] sm:$0xf]
    %v497 = vld [vmem:[%s6 + $0x30] sm:$0xf]
    %v498 = vld [vmem:[%s6 + $0x34] sm:$0xf]
    %v499 = vld [vmem:[%s6 + $0x38] sm:$0xf]
    %v500 = vld [vmem:[%s6 + $0x3c] sm:$0xf]
    %v517 = vunpack.c.l.b16 %v485
    %v518 = vunpack.c.l.b16 %v486
    %v519 = vunpack.c.l.b16 %v487
    %v520 = vunpack.c.l.b16 %v488
    %v521 = vunpack.c.l.b16 %v489
    %v522 = vunpack.c.l.b16 %v490
    %v523 = vunpack.c.l.b16 %v491
    %v524 = vunpack.c.l.b16 %v492
    %v525 = vunpack.c.l.b16 %v493
    %v526 = vunpack.c.l.b16 %v494
    %v527 = vunpack.c.l.b16 %v495
    %v528 = vunpack.c.l.b16 %v496
    %v529 = vunpack.c.l.b16 %v497
    %v530 = vunpack.c.l.b16 %v498
    %v531 = vunpack.c.l.b16 %v499
    %v532 = vunpack.c.l.b16 %v500
    %v533 = vpack.c.b16 %v518, %v517
    %v534 = vpack.c.b16 %v520, %v519
    %v535 = vpack.c.b16 %v522, %v521
    %v536 = vpack.c.b16 %v524, %v523
    %v537 = vpack.c.b16 %v526, %v525
    %v538 = vpack.c.b16 %v528, %v527
    %v539 = vpack.c.b16 %v530, %v529
    %v540 = vpack.c.b16 %v532, %v531
    %549 = vmatprep.subr.bf16.mxu0 0
    %550 = vmatpush1.bf16.msra.mxu0 %v540
    %551 = vmatprep.subr.bf16.mxu0 0
    %552 = vmatpush1.bf16.msra.mxu0 %v539
    %553 = vmatprep.subr.bf16.mxu0 0
    %554 = vmatpush1.bf16.msra.mxu0 %v538
    %555 = vmatprep.subr.bf16.mxu0 0
    %556 = vmatpush1.bf16.msra.mxu0 %v537
    %557 = vmatprep.subr.bf16.mxu0 0
    %558 = vmatpush1.bf16.msra.mxu0 %v536
    %559 = vmatprep.subr.bf16.mxu0 0
    %560 = vmatpush1.bf16.msra.mxu0 %v535
    %561 = vmatprep.subr.bf16.mxu0 0
    %562 = vmatpush1.bf16.msra.mxu0 %v534
    %563 = vmatprep.subr.bf16.mxu0 0
    %564 = vmatpush1.bf16.msra.mxu0 %v533
    %565 = vmatprep.subr.bf16.mxu0 0
    %566 = vmatpush2.bf16.msra.mxu0 0
    %567 = vmatprep.subr.bf16.mxu0 0
    %568 = vmatpush2.bf16.msra.mxu0 0
    %569 = vmatprep.subr.bf16.mxu0 0
    %570 = vmatpush2.bf16.msra.mxu0 0
    %571 = vmatprep.subr.bf16.mxu0 0
    %572 = vmatpush2.bf16.msra.mxu0 0
    %573 = vmatprep.subr.bf16.mxu0 0
    %574 = vmatpush2.bf16.msra.mxu0 0
    %575 = vmatprep.subr.bf16.mxu0 0
    %576 = vmatpush2.bf16.msra.mxu0 0
    %577 = vmatprep.subr.bf16.mxu0 0
    %578 = vmatpush2.bf16.msra.mxu0 0
    %579 = vmatprep.subr.bf16.mxu0 0
    %580 = vmatpush2.bf16.msra.mxu0 0
    %581 = vmatprep.mubr.bf16.mxu0 0
    %582 = vmatmul.mubr.bf16.gmra.mxu0 %v477
    %v583 = vpop.f32.mrf.mxu0
    %v584 = vadd.f32 0.0, %v583
    %v585 = vpop.f32.mrf.mxu0
    %v586 = vpop.f32.mrf.mxu0
    %v587 = vadd.f32 0.0, %v586
    %v588 = vpop.f32.mrf.mxu0
    %589 = vmatprep.mubr.bf16.mxu0 0
    %590 = vmatmul.mubr.bf16.gmra.mxu0 %v479
    %v591 = vpop.f32.mrf.mxu0
    %v592 = vadd.f32 0.0, %v591
    %v593 = vpop.f32.mrf.mxu0
    %v594 = vpop.f32.mrf.mxu0
    %v595 = vadd.f32 0.0, %v594
    %v596 = vpop.f32.mrf.mxu0
    %597 = vmatprep.mubr.bf16.mxu0 0
    %598 = vmatmul.mubr.bf16.gmra.mxu0 %v481
    %v599 = vpop.f32.mrf.mxu0
    %v600 = vadd.f32 0.0, %v599
    %v601 = vpop.f32.mrf.mxu0
    %v602 = vpop.f32.mrf.mxu0
    %v603 = vadd.f32 0.0, %v602
    %v604 = vpop.f32.mrf.mxu0
    %605 = vmatprep.mubr.bf16.mxu0 0
    %606 = vmatmul.mubr.bf16.gmra.mxu0 %v483
    %v607 = vpop.f32.mrf.mxu0
    %v608 = vadd.f32 0.0, %v607
    %v609 = vpop.f32.mrf.mxu0
    %v610 = vpop.f32.mrf.mxu0
    %v611 = vadd.f32 0.0, %v610
    %v612 = vpop.f32.mrf.mxu0
    %613 = vdwg.mxu0
    %614 = vmatprep.subr.bf16.mxu0 0
    %615 = vmatpush1.bf16.msra.mxu0 %v540
    %616 = vmatprep.subr.bf16.mxu0 0
    %617 = vmatpush1.bf16.msra.mxu0 %v539
    %618 = vmatprep.subr.bf16.mxu0 0
    %619 = vmatpush1.bf16.msra.mxu0 %v538
    %620 = vmatprep.subr.bf16.mxu0 0
    %621 = vmatpush1.bf16.msra.mxu0 %v537
    %622 = vmatprep.subr.bf16.mxu0 0
    %623 = vmatpush1.bf16.msra.mxu0 %v536
    %624 = vmatprep.subr.bf16.mxu0 0
    %625 = vmatpush1.bf16.msra.mxu0 %v535
    %626 = vmatprep.subr.bf16.mxu0 0
    %627 = vmatpush1.bf16.msra.mxu0 %v534
    %628 = vmatprep.subr.bf16.mxu0 0
    %629 = vmatpush1.bf16.msra.mxu0 %v533
    %630 = vmatprep.subr.bf16.mxu0 0
    %631 = vmatpush2.bf16.msra.mxu0 0
    %632 = vmatprep.subr.bf16.mxu0 0
    %633 = vmatpush2.bf16.msra.mxu0 0
    %634 = vmatprep.subr.bf16.mxu0 0
    %635 = vmatpush2.bf16.msra.mxu0 0
    %636 = vmatprep.subr.bf16.mxu0 0
    %637 = vmatpush2.bf16.msra.mxu0 0
    %638 = vmatprep.subr.bf16.mxu0 0
    %639 = vmatpush2.bf16.msra.mxu0 0
    %640 = vmatprep.subr.bf16.mxu0 0
    %641 = vmatpush2.bf16.msra.mxu0 0
    %642 = vmatprep.subr.bf16.mxu0 0
    %643 = vmatpush2.bf16.msra.mxu0 0
    %644 = vmatprep.subr.bf16.mxu0 0
    %645 = vmatpush2.bf16.msra.mxu0 0
    %646 = vmatprep.mubr.bf16.mxu0 0
    %647 = vmatmul.mubr.bf16.gmra.mxu0 %v478
    %v648 = vpop.f32.mrf.mxu0
    %v649 = vadd.f32 0.0, %v648
    %v650 = vpop.f32.mrf.mxu0
    %v651 = vpop.f32.mrf.mxu0
    %v652 = vadd.f32 0.0, %v651
    %v653 = vpop.f32.mrf.mxu0
    %654 = vmatprep.mubr.bf16.mxu0 0
    %655 = vmatmul.mubr.bf16.gmra.mxu0 %v480
    %v656 = vpop.f32.mrf.mxu0
    %v657 = vadd.f32 0.0, %v656
    %v658 = vpop.f32.mrf.mxu0
    %v659 = vpop.f32.mrf.mxu0
    %v660 = vadd.f32 0.0, %v659
    %v661 = vpop.f32.mrf.mxu0
    %662 = vmatprep.mubr.bf16.mxu0 0
    %663 = vmatmul.mubr.bf16.gmra.mxu0 %v482
    %v664 = vpop.f32.mrf.mxu0
    %v665 = vadd.f32 0.0, %v664
    %v666 = vpop.f32.mrf.mxu0
    %v667 = vpop.f32.mrf.mxu0
    %v668 = vadd.f32 0.0, %v667
    %v669 = vpop.f32.mrf.mxu0
    %670 = vmatprep.mubr.bf16.mxu0 0
    %671 = vmatmul.mubr.bf16.gmra.mxu0 %v484
    %v672 = vpop.f32.mrf.mxu0
    %v673 = vadd.f32 0.0, %v672
    %v674 = vpop.f32.mrf.mxu0
    %v675 = vpop.f32.mrf.mxu0
    %v676 = vadd.f32 0.0, %v675
    %v677 = vpop.f32.mrf.mxu0
    %678 = vdwg.mxu0
    %v679 = vpack.c.bf16 %v587, %v584
    %v680 = vpack.c.bf16 %v595, %v592
    %v681 = vpack.c.bf16 %v603, %v600
    %v682 = vpack.c.bf16 %v611, %v608
    %v683 = vpack.c.bf16 %v652, %v649
    %v684 = vpack.c.bf16 %v660, %v657
    %v685 = vpack.c.bf16 %v668, %v665
    %v686 = vpack.c.bf16 %v676, %v673
    %v687 = vld [vmem:[%s7] sm:$0xf]
    %v688 = vld [vmem:[%s7 + $0x4] sm:$0xf]
    %v689 = vld [vmem:[%s7 + $0x8] sm:$0xf]
    %v690 = vld [vmem:[%s7 + $0xc] sm:$0xf]
    %v691 = vld [vmem:[%s7 + $0x10] sm:$0xf]
    %v692 = vld [vmem:[%s7 + $0x14] sm:$0xf]
    %v693 = vld [vmem:[%s7 + $0x18] sm:$0xf]
    %v694 = vld [vmem:[%s7 + $0x1c] sm:$0xf]
    %v695 = vld [vmem:[%s7 + $0x20] sm:$0xf]
    %v696 = vld [vmem:[%s7 + $0x24] sm:$0xf]
    %v697 = vld [vmem:[%s7 + $0x28] sm:$0xf]
    %v698 = vld [vmem:[%s7 + $0x2c] sm:$0xf]
    %v699 = vld [vmem:[%s7 + $0x30] sm:$0xf]
    %v700 = vld [vmem:[%s7 + $0x34] sm:$0xf]
    %v701 = vld [vmem:[%s7 + $0x38] sm:$0xf]
    %v702 = vld [vmem:[%s7 + $0x3c] sm:$0xf]
    %v703 = vld [vmem:[%s8] sm:$0xf]
    %v704 = vld [vmem:[%s8 + $0x4] sm:$0xf]
    %v705 = vld [vmem:[%s8 + $0x8] sm:$0xf]
    %v706 = vld [vmem:[%s8 + $0xc] sm:$0xf]
    %v707 = vld [vmem:[%s9] sm:$0x1]
    %v709 = vlaneseq
    %v710 = vshrl.u32 %v709, 7
    %v711 = vsub.s32 0, %v710
    %v712 = vrot.slane %v707, %v711
    %v718 = vunpack.c.l.b16 %v703
    %v719 = vunpack.c.l.b16 %v704
    %v720 = vunpack.c.l.b16 %v705
    %v721 = vunpack.c.l.b16 %v706
    %v722 = vpack.c.b16 %v719, %v718
    %v723 = vpack.c.b16 %v721, %v720
    %v727 = vsel %vm335, %v202, 0
    %v730 = vsel %vm335, %v203, 0
    %v733 = vsel %vm335, %v204, 0
    %v736 = vsel %vm335, %v205, 0
    %v739 = vsel %vm335, %v206, 0
    %v742 = vsel %vm335, %v207, 0
    %v745 = vsel %vm335, %v208, 0
    %v748 = vsel %vm335, %v209, 0
    %750 = vmatprep.subr.bf16.mxu0 0
    %751 = vmatpush1.bf16.msra.mxu0 0
    %752 = vmatprep.subr.bf16.mxu0 0
    %753 = vmatpush1.bf16.msra.mxu0 0
    %754 = vmatprep.subr.bf16.mxu0 0
    %755 = vmatpush1.bf16.msra.mxu0 0
    %756 = vmatprep.subr.bf16.mxu0 0
    %757 = vmatpush1.bf16.msra.mxu0 0
    %758 = vmatprep.subr.bf16.mxu0 0
    %759 = vmatpush1.bf16.msra.mxu0 0
    %760 = vmatprep.subr.bf16.mxu0 0
    %761 = vmatpush1.bf16.msra.mxu0 0
    %762 = vmatprep.subr.bf16.mxu0 0
    %763 = vmatpush1.bf16.msra.mxu0 %v723
    %764 = vmatprep.subr.bf16.mxu0 0
    %765 = vmatpush1.bf16.msra.mxu0 %v722
    %766 = vmatprep.subr.bf16.mxu0 0
    %767 = vmatpush2.bf16.msra.mxu0 0
    %768 = vmatprep.subr.bf16.mxu0 0
    %769 = vmatpush2.bf16.msra.mxu0 0
    %770 = vmatprep.subr.bf16.mxu0 0
    %771 = vmatpush2.bf16.msra.mxu0 0
    %772 = vmatprep.subr.bf16.mxu0 0
    %773 = vmatpush2.bf16.msra.mxu0 0
    %774 = vmatprep.subr.bf16.mxu0 0
    %775 = vmatpush2.bf16.msra.mxu0 0
    %776 = vmatprep.subr.bf16.mxu0 0
    %777 = vmatpush2.bf16.msra.mxu0 0
    %778 = vmatprep.subr.bf16.mxu0 0
    %779 = vmatpush2.bf16.msra.mxu0 0
    %780 = vmatprep.subr.bf16.mxu0 0
    %781 = vmatpush2.bf16.msra.mxu0 0
    %782 = vmatprep.mubr.bf16.mxu0 0
    %783 = vmatmul.mubr.bf16.gmra.mxu0 %v727
    %v784 = vpop.f32.mrf.mxu0
    %v785 = vadd.f32 %v712, %v784
    %v786 = vpop.f32.mrf.mxu0
    %v787 = vpop.f32.mrf.mxu0
    %v788 = vadd.f32 %v712, %v787
    %v789 = vpop.f32.mrf.mxu0
    %790 = vmatprep.mubr.bf16.mxu0 0
    %791 = vmatmul.mubr.bf16.gmra.mxu0 %v730
    %v792 = vpop.f32.mrf.mxu0
    %v793 = vadd.f32 %v712, %v792
    %v794 = vpop.f32.mrf.mxu0
    %v795 = vpop.f32.mrf.mxu0
    %v796 = vadd.f32 %v712, %v795
    %v797 = vpop.f32.mrf.mxu0
    %798 = vmatprep.mubr.bf16.mxu0 0
    %799 = vmatmul.mubr.bf16.gmra.mxu0 %v733
    %v800 = vpop.f32.mrf.mxu0
    %v801 = vadd.f32 %v712, %v800
    %v802 = vpop.f32.mrf.mxu0
    %v803 = vpop.f32.mrf.mxu0
    %v804 = vadd.f32 %v712, %v803
    %v805 = vpop.f32.mrf.mxu0
    %806 = vmatprep.mubr.bf16.mxu0 0
    %807 = vmatmul.mubr.bf16.gmra.mxu0 %v736
    %v808 = vpop.f32.mrf.mxu0
    %v809 = vadd.f32 %v712, %v808
    %v810 = vpop.f32.mrf.mxu0
    %v811 = vpop.f32.mrf.mxu0
    %v812 = vadd.f32 %v712, %v811
    %v813 = vpop.f32.mrf.mxu0
    %814 = vmatprep.mubr.bf16.mxu0 0
    %815 = vmatmul.mubr.bf16.gmra.mxu0 %v739
    %v816 = vpop.f32.mrf.mxu0
    %v817 = vadd.f32 %v712, %v816
    %v818 = vpop.f32.mrf.mxu0
    %v819 = vpop.f32.mrf.mxu0
    %v820 = vadd.f32 %v712, %v819
    %v821 = vpop.f32.mrf.mxu0
    %822 = vmatprep.mubr.bf16.mxu0 0
    %823 = vmatmul.mubr.bf16.gmra.mxu0 %v742
    %v824 = vpop.f32.mrf.mxu0
    %v825 = vadd.f32 %v712, %v824
    %v826 = vpop.f32.mrf.mxu0
    %v827 = vpop.f32.mrf.mxu0
    %v828 = vadd.f32 %v712, %v827
    %v829 = vpop.f32.mrf.mxu0
    %830 = vmatprep.mubr.bf16.mxu0 0
    %831 = vmatmul.mubr.bf16.gmra.mxu0 %v745
    %v832 = vpop.f32.mrf.mxu0
    %v833 = vadd.f32 %v712, %v832
    %v834 = vpop.f32.mrf.mxu0
    %v835 = vpop.f32.mrf.mxu0
    %v836 = vadd.f32 %v712, %v835
    %v837 = vpop.f32.mrf.mxu0
    %838 = vmatprep.mubr.bf16.mxu0 0
    %839 = vmatmul.mubr.bf16.gmra.mxu0 %v748
    %v840 = vpop.f32.mrf.mxu0
    %v841 = vadd.f32 %v712, %v840
    %v842 = vpop.f32.mrf.mxu0
    %v843 = vpop.f32.mrf.mxu0
    %v844 = vadd.f32 %v712, %v843
    %v845 = vpop.f32.mrf.mxu0
    %846 = vdwg.mxu0
    %v863 = vunpack.c.l.b16 %v687
    %v864 = vunpack.c.l.b16 %v688
    %v865 = vunpack.c.l.b16 %v689
    %v866 = vunpack.c.l.b16 %v690
    %v867 = vunpack.c.l.b16 %v691
    %v868 = vunpack.c.l.b16 %v692
    %v869 = vunpack.c.l.b16 %v693
    %v870 = vunpack.c.l.b16 %v694
    %v871 = vunpack.c.l.b16 %v695
    %v872 = vunpack.c.l.b16 %v696
    %v873 = vunpack.c.l.b16 %v697
    %v874 = vunpack.c.l.b16 %v698
    %v875 = vunpack.c.l.b16 %v699
    %v876 = vunpack.c.l.b16 %v700
    %v877 = vunpack.c.l.b16 %v701
    %v878 = vunpack.c.l.b16 %v702
    %v879 = vpack.c.b16 %v864, %v863
    %v880 = vpack.c.b16 %v866, %v865
    %v881 = vpack.c.b16 %v868, %v867
    %v882 = vpack.c.b16 %v870, %v869
    %v883 = vpack.c.b16 %v872, %v871
    %v884 = vpack.c.b16 %v874, %v873
    %v885 = vpack.c.b16 %v876, %v875
    %v886 = vpack.c.b16 %v878, %v877
    %895 = vmatprep.subr.bf16.mxu0 0
    %896 = vmatpush1.bf16.msra.mxu0 %v686
    %897 = vmatprep.subr.bf16.mxu0 0
    %898 = vmatpush1.bf16.msra.mxu0 %v685
    %899 = vmatprep.subr.bf16.mxu0 0
    %900 = vmatpush1.bf16.msra.mxu0 %v684
    %901 = vmatprep.subr.bf16.mxu0 0
    %902 = vmatpush1.bf16.msra.mxu0 %v683
    %903 = vmatprep.subr.bf16.mxu0 0
    %904 = vmatpush1.bf16.msra.mxu0 %v682
    %905 = vmatprep.subr.bf16.mxu0 0
    %906 = vmatpush1.bf16.msra.mxu0 %v681
    %907 = vmatprep.subr.bf16.mxu0 0
    %908 = vmatpush1.bf16.msra.mxu0 %v680
    %909 = vmatprep.subr.bf16.mxu0 0
    %910 = vmatpush1.bf16.msra.mxu0 %v679
    %911 = vmatprep.subr.bf16.mxu0 0
    %912 = vmatpush2.bf16.msra.mxu0 0
    %913 = vmatprep.subr.bf16.mxu0 0
    %914 = vmatpush2.bf16.msra.mxu0 0
    %915 = vmatprep.subr.bf16.mxu0 0
    %916 = vmatpush2.bf16.msra.mxu0 0
    %917 = vmatprep.subr.bf16.mxu0 0
    %918 = vmatpush2.bf16.msra.mxu0 0
    %919 = vmatprep.subr.bf16.mxu0 0
    %920 = vmatpush2.bf16.msra.mxu0 0
    %921 = vmatprep.subr.bf16.mxu0 0
    %922 = vmatpush2.bf16.msra.mxu0 0
    %923 = vmatprep.subr.bf16.mxu0 0
    %924 = vmatpush2.bf16.msra.mxu0 0
    %925 = vmatprep.subr.bf16.mxu0 0
    %926 = vmatpush2.bf16.msra.mxu0 0
    %927 = vmatprep.mubr.bf16.mxu0 0
    %928 = vmatmul.mubr.bf16.gmra.mxu0 %v879
    %v929 = vpop.f32.mrf.mxu0
    %v930 = vadd.f32 %v785, %v929
    %v931 = vpop.f32.mrf.mxu0
    %v932 = vpop.f32.mrf.mxu0
    %v933 = vadd.f32 %v788, %v932
    %v934 = vpop.f32.mrf.mxu0
    %935 = vmatprep.mubr.bf16.mxu0 0
    %936 = vmatmul.mubr.bf16.gmra.mxu0 %v880
    %v937 = vpop.f32.mrf.mxu0
    %v938 = vadd.f32 %v793, %v937
    %v939 = vpop.f32.mrf.mxu0
    %v940 = vpop.f32.mrf.mxu0
    %v941 = vadd.f32 %v796, %v940
    %v942 = vpop.f32.mrf.mxu0
    %943 = vmatprep.mubr.bf16.mxu0 0
    %944 = vmatmul.mubr.bf16.gmra.mxu0 %v881
    %v945 = vpop.f32.mrf.mxu0
    %v946 = vadd.f32 %v801, %v945
    %v947 = vpop.f32.mrf.mxu0
    %v948 = vpop.f32.mrf.mxu0
    %v949 = vadd.f32 %v804, %v948
    %v950 = vpop.f32.mrf.mxu0
    %951 = vmatprep.mubr.bf16.mxu0 0
    %952 = vmatmul.mubr.bf16.gmra.mxu0 %v882
    %v953 = vpop.f32.mrf.mxu0
    %v954 = vadd.f32 %v809, %v953
    %v955 = vpop.f32.mrf.mxu0
    %v956 = vpop.f32.mrf.mxu0
    %v957 = vadd.f32 %v812, %v956
    %v958 = vpop.f32.mrf.mxu0
    %959 = vmatprep.mubr.bf16.mxu0 0
    %960 = vmatmul.mubr.bf16.gmra.mxu0 %v883
    %v961 = vpop.f32.mrf.mxu0
    %v962 = vadd.f32 %v817, %v961
    %v963 = vpop.f32.mrf.mxu0
    %v964 = vpop.f32.mrf.mxu0
    %v965 = vadd.f32 %v820, %v964
    %v966 = vpop.f32.mrf.mxu0
    %967 = vmatprep.mubr.bf16.mxu0 0
    %968 = vmatmul.mubr.bf16.gmra.mxu0 %v884
    %v969 = vpop.f32.mrf.mxu0
    %v970 = vadd.f32 %v825, %v969
    %v971 = vpop.f32.mrf.mxu0
    %v972 = vpop.f32.mrf.mxu0
    %v973 = vadd.f32 %v828, %v972
    %v974 = vpop.f32.mrf.mxu0
    %975 = vmatprep.mubr.bf16.mxu0 0
    %976 = vmatmul.mubr.bf16.gmra.mxu0 %v885
    %v977 = vpop.f32.mrf.mxu0
    %v978 = vadd.f32 %v833, %v977
    %v979 = vpop.f32.mrf.mxu0
    %v980 = vpop.f32.mrf.mxu0
    %v981 = vadd.f32 %v836, %v980
    %v982 = vpop.f32.mrf.mxu0
    %983 = vmatprep.mubr.bf16.mxu0 0
    %984 = vmatmul.mubr.bf16.gmra.mxu0 %v886
    %v985 = vpop.f32.mrf.mxu0
    %v986 = vadd.f32 %v841, %v985
    %v987 = vpop.f32.mrf.mxu0
    %v988 = vpop.f32.mrf.mxu0
    %v989 = vadd.f32 %v844, %v988
    %v990 = vpop.f32.mrf.mxu0
    %991 = vdwg.mxu0
    %v992 = vmul.f32 %v930, 0.5
    %v993 = vmul.f32 %v933, 0.5
    %v994 = vmul.f32 %v938, 0.5
    %v995 = vmul.f32 %v941, 0.5
    %v996 = vmul.f32 %v946, 0.5
    %v997 = vmul.f32 %v949, 0.5
    %v998 = vmul.f32 %v954, 0.5
    %v999 = vmul.f32 %v957, 0.5
    %v1000 = vmul.f32 %v962, 0.5
    %v1001 = vmul.f32 %v965, 0.5
    %v1002 = vmul.f32 %v970, 0.5
    %v1003 = vmul.f32 %v973, 0.5
    %v1004 = vmul.f32 %v978, 0.5
    %v1005 = vmul.f32 %v981, 0.5
    %v1006 = vmul.f32 %v986, 0.5
    %v1007 = vmul.f32 %v989, 0.5
    %v1008 = vmul.f32 %v930, 0.044715
    %v1009 = vmul.f32 %v933, 0.044715
    %v1010 = vmul.f32 %v938, 0.044715
    %v1011 = vmul.f32 %v941, 0.044715
    %v1012 = vmul.f32 %v946, 0.044715
    %v1013 = vmul.f32 %v949, 0.044715
    %v1014 = vmul.f32 %v954, 0.044715
    %v1015 = vmul.f32 %v957, 0.044715
    %v1016 = vmul.f32 %v962, 0.044715
    %v1017 = vmul.f32 %v965, 0.044715
    %v1018 = vmul.f32 %v970, 0.044715
    %v1019 = vmul.f32 %v973, 0.044715
    %v1020 = vmul.f32 %v978, 0.044715
    %v1021 = vmul.f32 %v981, 0.044715
    %v1022 = vmul.f32 %v986, 0.044715
    %v1023 = vmul.f32 %v989, 0.044715
    %v1024 = vmul.f32 %v1008, %v930
    %v1025 = vmul.f32 %v1009, %v933
    %v1026 = vmul.f32 %v1010, %v938
    %v1027 = vmul.f32 %v1011, %v941
    %v1028 = vmul.f32 %v1012, %v946
    %v1029 = vmul.f32 %v1013, %v949
    %v1030 = vmul.f32 %v1014, %v954
    %v1031 = vmul.f32 %v1015, %v957
    %v1032 = vmul.f32 %v1016, %v962
    %v1033 = vmul.f32 %v1017, %v965
    %v1034 = vmul.f32 %v1018, %v970
    %v1035 = vmul.f32 %v1019, %v973
    %v1036 = vmul.f32 %v1020, %v978
    %v1037 = vmul.f32 %v1021, %v981
    %v1038 = vmul.f32 %v1022, %v986
    %v1039 = vmul.f32 %v1023, %v989
    %v1040 = vmul.f32 %v1024, %v930
    %v1041 = vmul.f32 %v1025, %v933
    %v1042 = vmul.f32 %v1026, %v938
    %v1043 = vmul.f32 %v1027, %v941
    %v1044 = vmul.f32 %v1028, %v946
    %v1045 = vmul.f32 %v1029, %v949
    %v1046 = vmul.f32 %v1030, %v954
    %v1047 = vmul.f32 %v1031, %v957
    %v1048 = vmul.f32 %v1032, %v962
    %v1049 = vmul.f32 %v1033, %v965
    %v1050 = vmul.f32 %v1034, %v970
    %v1051 = vmul.f32 %v1035, %v973
    %v1052 = vmul.f32 %v1036, %v978
    %v1053 = vmul.f32 %v1037, %v981
    %v1054 = vmul.f32 %v1038, %v986
    %v1055 = vmul.f32 %v1039, %v989
    %v1056 = vadd.f32 %v930, %v1040
    %v1057 = vadd.f32 %v933, %v1041
    %v1058 = vadd.f32 %v938, %v1042
    %v1059 = vadd.f32 %v941, %v1043
    %v1060 = vadd.f32 %v946, %v1044
    %v1061 = vadd.f32 %v949, %v1045
    %v1062 = vadd.f32 %v954, %v1046
    %v1063 = vadd.f32 %v957, %v1047
    %v1064 = vadd.f32 %v962, %v1048
    %v1065 = vadd.f32 %v965, %v1049
    %v1066 = vadd.f32 %v970, %v1050
    %v1067 = vadd.f32 %v973, %v1051
    %v1068 = vadd.f32 %v978, %v1052
    %v1069 = vadd.f32 %v981, %v1053
    %v1070 = vadd.f32 %v986, %v1054
    %v1071 = vadd.f32 %v989, %v1055
    %v1072 = vmul.f32 %v1056, 0.7978846
    %v1073 = vmul.f32 %v1057, 0.7978846
    %v1074 = vmul.f32 %v1058, 0.7978846
    %v1075 = vmul.f32 %v1059, 0.7978846
    %v1076 = vmul.f32 %v1060, 0.7978846
    %v1077 = vmul.f32 %v1061, 0.7978846
    %v1078 = vmul.f32 %v1062, 0.7978846
    %v1079 = vmul.f32 %v1063, 0.7978846
    %v1080 = vmul.f32 %v1064, 0.7978846
    %v1081 = vmul.f32 %v1065, 0.7978846
    %v1082 = vmul.f32 %v1066, 0.7978846
    %v1083 = vmul.f32 %v1067, 0.7978846
    %v1084 = vmul.f32 %v1068, 0.7978846
    %v1085 = vmul.f32 %v1069, 0.7978846
    %v1086 = vmul.f32 %v1070, 0.7978846
    %v1087 = vmul.f32 %v1071, 0.7978846
    %v1088 = vtanh.pop %v1072
    %v1089 = vtanh.pop %v1073
    %v1090 = vtanh.pop %v1074
    %v1091 = vtanh.pop %v1075
    %v1092 = vtanh.pop %v1076
    %v1093 = vtanh.pop %v1077
    %v1094 = vtanh.pop %v1078
    %v1095 = vtanh.pop %v1079
    %v1096 = vtanh.pop %v1080
    %v1097 = vtanh.pop %v1081
    %v1098 = vtanh.pop %v1082
    %v1099 = vtanh.pop %v1083
    %v1100 = vtanh.pop %v1084
    %v1101 = vtanh.pop %v1085
    %v1102 = vtanh.pop %v1086
    %v1103 = vtanh.pop %v1087
    %v1104 = vadd.f32 %v1088, 1.0
    %v1105 = vadd.f32 %v1089, 1.0
    %v1106 = vadd.f32 %v1090, 1.0
    %v1107 = vadd.f32 %v1091, 1.0
    %v1108 = vadd.f32 %v1092, 1.0
    %v1109 = vadd.f32 %v1093, 1.0
    %v1110 = vadd.f32 %v1094, 1.0
    %v1111 = vadd.f32 %v1095, 1.0
    %v1112 = vadd.f32 %v1096, 1.0
    %v1113 = vadd.f32 %v1097, 1.0
    %v1114 = vadd.f32 %v1098, 1.0
    %v1115 = vadd.f32 %v1099, 1.0
    %v1116 = vadd.f32 %v1100, 1.0
    %v1117 = vadd.f32 %v1101, 1.0
    %v1118 = vadd.f32 %v1102, 1.0
    %v1119 = vadd.f32 %v1103, 1.0
    %v1120 = vmul.f32 %v992, %v1104
    %v1121 = vmul.f32 %v993, %v1105
    %v1122 = vmul.f32 %v994, %v1106
    %v1123 = vmul.f32 %v995, %v1107
    %v1124 = vmul.f32 %v996, %v1108
    %v1125 = vmul.f32 %v997, %v1109
    %v1126 = vmul.f32 %v998, %v1110
    %v1127 = vmul.f32 %v999, %v1111
    %v1128 = vmul.f32 %v1000, %v1112
    %v1129 = vmul.f32 %v1001, %v1113
    %v1130 = vmul.f32 %v1002, %v1114
    %v1131 = vmul.f32 %v1003, %v1115
    %v1132 = vmul.f32 %v1004, %v1116
    %v1133 = vmul.f32 %v1005, %v1117
    %v1134 = vmul.f32 %v1006, %v1118
    %v1135 = vmul.f32 %v1007, %v1119
    %v1136 = vpack.c.bf16 %v1121, %v1120
    %v1137 = vpack.c.bf16 %v1123, %v1122
    %v1138 = vpack.c.bf16 %v1125, %v1124
    %v1139 = vpack.c.bf16 %v1127, %v1126
    %v1140 = vpack.c.bf16 %v1129, %v1128
    %v1141 = vpack.c.bf16 %v1131, %v1130
    %v1142 = vpack.c.bf16 %v1133, %v1132
    %v1143 = vpack.c.bf16 %v1135, %v1134
    %v1144 = vld [vmem:[%s10] sm:$0xf]
    %v1145 = vld [vmem:[%s10 + $0x4] sm:$0xf]
    %v1146 = vld [vmem:[%s10 + $0x8] sm:$0xf]
    %v1147 = vld [vmem:[%s10 + $0xc] sm:$0xf]
    %v1148 = vld [vmem:[%s11] sm:$0x1]
    %v1150 = vlaneseq
    %v1151 = vshrl.u32 %v1150, 7
    %v1152 = vsub.s32 0, %v1151
    %v1153 = vrot.slane %v1148, %v1152
    %v1159 = vunpack.c.l.b16 %v1144
    %v1160 = vunpack.c.l.b16 %v1145
    %v1161 = vunpack.c.l.b16 %v1146
    %v1162 = vunpack.c.l.b16 %v1147
    %v1163 = vpack.c.b16 %v1160, %v1159
    %v1164 = vpack.c.b16 %v1162, %v1161
    %v1168 = vsel %vm335, %v1136, 0
    %v1171 = vsel %vm335, %v1137, 0
    %v1174 = vsel %vm335, %v1138, 0
    %v1177 = vsel %vm335, %v1139, 0
    %v1180 = vsel %vm335, %v1140, 0
    %v1183 = vsel %vm335, %v1141, 0
    %v1186 = vsel %vm335, %v1142, 0
    %v1189 = vsel %vm335, %v1143, 0
    %1191 = vmatprep.subr.bf16.mxu0 0
    %1192 = vmatpush1.bf16.msra.mxu0 0
    %1193 = vmatprep.subr.bf16.mxu0 0
    %1194 = vmatpush1.bf16.msra.mxu0 0
    %1195 = vmatprep.subr.bf16.mxu0 0
    %1196 = vmatpush1.bf16.msra.mxu0 0
    %1197 = vmatprep.subr.bf16.mxu0 0
    %1198 = vmatpush1.bf16.msra.mxu0 0
    %1199 = vmatprep.subr.bf16.mxu0 0
    %1200 = vmatpush1.bf16.msra.mxu0 0
    %1201 = vmatprep.subr.bf16.mxu0 0
    %1202 = vmatpush1.bf16.msra.mxu0 0
    %1203 = vmatprep.subr.bf16.mxu0 0
    %1204 = vmatpush1.bf16.msra.mxu0 %v1164
    %1205 = vmatprep.subr.bf16.mxu0 0
    %1206 = vmatpush1.bf16.msra.mxu0 %v1163
    %1207 = vmatprep.subr.bf16.mxu0 0
    %1208 = vmatpush2.bf16.msra.mxu0 0
    %1209 = vmatprep.subr.bf16.mxu0 0
    %1210 = vmatpush2.bf16.msra.mxu0 0
    %1211 = vmatprep.subr.bf16.mxu0 0
    %1212 = vmatpush2.bf16.msra.mxu0 0
    %1213 = vmatprep.subr.bf16.mxu0 0
    %1214 = vmatpush2.bf16.msra.mxu0 0
    %1215 = vmatprep.subr.bf16.mxu0 0
    %1216 = vmatpush2.bf16.msra.mxu0 0
    %1217 = vmatprep.subr.bf16.mxu0 0
    %1218 = vmatpush2.bf16.msra.mxu0 0
    %1219 = vmatprep.subr.bf16.mxu0 0
    %1220 = vmatpush2.bf16.msra.mxu0 0
    %1221 = vmatprep.subr.bf16.mxu0 0
    %1222 = vmatpush2.bf16.msra.mxu0 0
    %1223 = vmatprep.mubr.bf16.mxu0 0
    %1224 = vmatmul.mubr.bf16.gmra.mxu0 %v1168
    %v1225 = vpop.f32.mrf.mxu0
    %v1226 = vadd.f32 %v1153, %v1225
    %v1227 = vpop.f32.mrf.mxu0
    %v1228 = vpop.f32.mrf.mxu0
    %v1229 = vadd.f32 %v1153, %v1228
    %v1230 = vpop.f32.mrf.mxu0
    %1231 = vmatprep.mubr.bf16.mxu0 0
    %1232 = vmatmul.mubr.bf16.gmra.mxu0 %v1171
    %v1233 = vpop.f32.mrf.mxu0
    %v1234 = vadd.f32 %v1153, %v1233
    %v1235 = vpop.f32.mrf.mxu0
    %v1236 = vpop.f32.mrf.mxu0
    %v1237 = vadd.f32 %v1153, %v1236
    %v1238 = vpop.f32.mrf.mxu0
    %1239 = vmatprep.mubr.bf16.mxu0 0
    %1240 = vmatmul.mubr.bf16.gmra.mxu0 %v1174
    %v1241 = vpop.f32.mrf.mxu0
    %v1242 = vadd.f32 %v1153, %v1241
    %v1243 = vpop.f32.mrf.mxu0
    %v1244 = vpop.f32.mrf.mxu0
    %v1245 = vadd.f32 %v1153, %v1244
    %v1246 = vpop.f32.mrf.mxu0
    %1247 = vmatprep.mubr.bf16.mxu0 0
    %1248 = vmatmul.mubr.bf16.gmra.mxu0 %v1177
    %v1249 = vpop.f32.mrf.mxu0
    %v1250 = vadd.f32 %v1153, %v1249
    %v1251 = vpop.f32.mrf.mxu0
    %v1252 = vpop.f32.mrf.mxu0
    %v1253 = vadd.f32 %v1153, %v1252
    %v1254 = vpop.f32.mrf.mxu0
    %1255 = vmatprep.mubr.bf16.mxu0 0
    %1256 = vmatmul.mubr.bf16.gmra.mxu0 %v1180
    %v1257 = vpop.f32.mrf.mxu0
    %v1258 = vadd.f32 %v1153, %v1257
    %v1259 = vpop.f32.mrf.mxu0
    %v1260 = vpop.f32.mrf.mxu0
    %v1261 = vadd.f32 %v1153, %v1260
    %v1262 = vpop.f32.mrf.mxu0
    %1263 = vmatprep.mubr.bf16.mxu0 0
    %1264 = vmatmul.mubr.bf16.gmra.mxu0 %v1183
    %v1265 = vpop.f32.mrf.mxu0
    %v1266 = vadd.f32 %v1153, %v1265
    %v1267 = vpop.f32.mrf.mxu0
    %v1268 = vpop.f32.mrf.mxu0
    %v1269 = vadd.f32 %v1153, %v1268
    %v1270 = vpop.f32.mrf.mxu0
    %1271 = vmatprep.mubr.bf16.mxu0 0
    %1272 = vmatmul.mubr.bf16.gmra.mxu0 %v1186
    %v1273 = vpop.f32.mrf.mxu0
    %v1274 = vadd.f32 %v1153, %v1273
    %v1275 = vpop.f32.mrf.mxu0
    %v1276 = vpop.f32.mrf.mxu0
    %v1277 = vadd.f32 %v1153, %v1276
    %v1278 = vpop.f32.mrf.mxu0
    %1279 = vmatprep.mubr.bf16.mxu0 0
    %1280 = vmatmul.mubr.bf16.gmra.mxu0 %v1189
    %v1281 = vpop.f32.mrf.mxu0
    %v1282 = vadd.f32 %v1153, %v1281
    %v1283 = vpop.f32.mrf.mxu0
    %v1284 = vpop.f32.mrf.mxu0
    %v1285 = vadd.f32 %v1153, %v1284
    %v1286 = vpop.f32.mrf.mxu0
    %1287 = vdwg.mxu0
    %v1288 = vmul.f32 %v1226, 0.5
    %v1289 = vmul.f32 %v1229, 0.5
    %v1290 = vmul.f32 %v1234, 0.5
    %v1291 = vmul.f32 %v1237, 0.5
    %v1292 = vmul.f32 %v1242, 0.5
    %v1293 = vmul.f32 %v1245, 0.5
    %v1294 = vmul.f32 %v1250, 0.5
    %v1295 = vmul.f32 %v1253, 0.5
    %v1296 = vmul.f32 %v1258, 0.5
    %v1297 = vmul.f32 %v1261, 0.5
    %v1298 = vmul.f32 %v1266, 0.5
    %v1299 = vmul.f32 %v1269, 0.5
    %v1300 = vmul.f32 %v1274, 0.5
    %v1301 = vmul.f32 %v1277, 0.5
    %v1302 = vmul.f32 %v1282, 0.5
    %v1303 = vmul.f32 %v1285, 0.5
    %v1304 = vmul.f32 %v1226, 0.044715
    %v1305 = vmul.f32 %v1229, 0.044715
    %v1306 = vmul.f32 %v1234, 0.044715
    %v1307 = vmul.f32 %v1237, 0.044715
    %v1308 = vmul.f32 %v1242, 0.044715
    %v1309 = vmul.f32 %v1245, 0.044715
    %v1310 = vmul.f32 %v1250, 0.044715
    %v1311 = vmul.f32 %v1253, 0.044715
    %v1312 = vmul.f32 %v1258, 0.044715
    %v1313 = vmul.f32 %v1261, 0.044715
    %v1314 = vmul.f32 %v1266, 0.044715
    %v1315 = vmul.f32 %v1269, 0.044715
    %v1316 = vmul.f32 %v1274, 0.044715
    %v1317 = vmul.f32 %v1277, 0.044715
    %v1318 = vmul.f32 %v1282, 0.044715
    %v1319 = vmul.f32 %v1285, 0.044715
    %v1320 = vmul.f32 %v1304, %v1226
    %v1321 = vmul.f32 %v1305, %v1229
    %v1322 = vmul.f32 %v1306, %v1234
    %v1323 = vmul.f32 %v1307, %v1237
    %v1324 = vmul.f32 %v1308, %v1242
    %v1325 = vmul.f32 %v1309, %v1245
    %v1326 = vmul.f32 %v1310, %v1250
    %v1327 = vmul.f32 %v1311, %v1253
    %v1328 = vmul.f32 %v1312, %v1258
    %v1329 = vmul.f32 %v1313, %v1261
    %v1330 = vmul.f32 %v1314, %v1266
    %v1331 = vmul.f32 %v1315, %v1269
    %v1332 = vmul.f32 %v1316, %v1274
    %v1333 = vmul.f32 %v1317, %v1277
    %v1334 = vmul.f32 %v1318, %v1282
    %v1335 = vmul.f32 %v1319, %v1285
    %v1336 = vmul.f32 %v1320, %v1226
    %v1337 = vmul.f32 %v1321, %v1229
    %v1338 = vmul.f32 %v1322, %v1234
    %v1339 = vmul.f32 %v1323, %v1237
    %v1340 = vmul.f32 %v1324, %v1242
    %v1341 = vmul.f32 %v1325, %v1245
    %v1342 = vmul.f32 %v1326, %v1250
    %v1343 = vmul.f32 %v1327, %v1253
    %v1344 = vmul.f32 %v1328, %v1258
    %v1345 = vmul.f32 %v1329, %v1261
    %v1346 = vmul.f32 %v1330, %v1266
    %v1347 = vmul.f32 %v1331, %v1269
    %v1348 = vmul.f32 %v1332, %v1274
    %v1349 = vmul.f32 %v1333, %v1277
    %v1350 = vmul.f32 %v1334, %v1282
    %v1351 = vmul.f32 %v1335, %v1285
    %v1352 = vadd.f32 %v1226, %v1336
    %v1353 = vadd.f32 %v1229, %v1337
    %v1354 = vadd.f32 %v1234, %v1338
    %v1355 = vadd.f32 %v1237, %v1339
    %v1356 = vadd.f32 %v1242, %v1340
    %v1357 = vadd.f32 %v1245, %v1341
    %v1358 = vadd.f32 %v1250, %v1342
    %v1359 = vadd.f32 %v1253, %v1343
    %v1360 = vadd.f32 %v1258, %v1344
    %v1361 = vadd.f32 %v1261, %v1345
    %v1362 = vadd.f32 %v1266, %v1346
    %v1363 = vadd.f32 %v1269, %v1347
    %v1364 = vadd.f32 %v1274, %v1348
    %v1365 = vadd.f32 %v1277, %v1349
    %v1366 = vadd.f32 %v1282, %v1350
    %v1367 = vadd.f32 %v1285, %v1351
    %v1368 = vmul.f32 %v1352, 0.7978846
    %v1369 = vmul.f32 %v1353, 0.7978846
    %v1370 = vmul.f32 %v1354, 0.7978846
    %v1371 = vmul.f32 %v1355, 0.7978846
    %v1372 = vmul.f32 %v1356, 0.7978846
    %v1373 = vmul.f32 %v1357, 0.7978846
    %v1374 = vmul.f32 %v1358, 0.7978846
    %v1375 = vmul.f32 %v1359, 0.7978846
    %v1376 = vmul.f32 %v1360, 0.7978846
    %v1377 = vmul.f32 %v1361, 0.7978846
    %v1378 = vmul.f32 %v1362, 0.7978846
    %v1379 = vmul.f32 %v1363, 0.7978846
    %v1380 = vmul.f32 %v1364, 0.7978846
    %v1381 = vmul.f32 %v1365, 0.7978846
    %v1382 = vmul.f32 %v1366, 0.7978846
    %v1383 = vmul.f32 %v1367, 0.7978846
    %v1384 = vtanh.pop %v1368
    %v1385 = vtanh.pop %v1369
    %v1386 = vtanh.pop %v1370
    %v1387 = vtanh.pop %v1371
    %v1388 = vtanh.pop %v1372
    %v1389 = vtanh.pop %v1373
    %v1390 = vtanh.pop %v1374
    %v1391 = vtanh.pop %v1375
    %v1392 = vtanh.pop %v1376
    %v1393 = vtanh.pop %v1377
    %v1394 = vtanh.pop %v1378
    %v1395 = vtanh.pop %v1379
    %v1396 = vtanh.pop %v1380
    %v1397 = vtanh.pop %v1381
    %v1398 = vtanh.pop %v1382
    %v1399 = vtanh.pop %v1383
    %v1400 = vadd.f32 %v1384, 1.0
    %v1401 = vadd.f32 %v1385, 1.0
    %v1402 = vadd.f32 %v1386, 1.0
    %v1403 = vadd.f32 %v1387, 1.0
    %v1404 = vadd.f32 %v1388, 1.0
    %v1405 = vadd.f32 %v1389, 1.0
    %v1406 = vadd.f32 %v1390, 1.0
    %v1407 = vadd.f32 %v1391, 1.0
    %v1408 = vadd.f32 %v1392, 1.0
    %v1409 = vadd.f32 %v1393, 1.0
    %v1410 = vadd.f32 %v1394, 1.0
    %v1411 = vadd.f32 %v1395, 1.0
    %v1412 = vadd.f32 %v1396, 1.0
    %v1413 = vadd.f32 %v1397, 1.0
    %v1414 = vadd.f32 %v1398, 1.0
    %v1415 = vadd.f32 %v1399, 1.0
    %v1416 = vmul.f32 %v1288, %v1400
    %v1417 = vmul.f32 %v1289, %v1401
    %v1418 = vmul.f32 %v1290, %v1402
    %v1419 = vmul.f32 %v1291, %v1403
    %v1420 = vmul.f32 %v1292, %v1404
    %v1421 = vmul.f32 %v1293, %v1405
    %v1422 = vmul.f32 %v1294, %v1406
    %v1423 = vmul.f32 %v1295, %v1407
    %v1424 = vmul.f32 %v1296, %v1408
    %v1425 = vmul.f32 %v1297, %v1409
    %v1426 = vmul.f32 %v1298, %v1410
    %v1427 = vmul.f32 %v1299, %v1411
    %v1428 = vmul.f32 %v1300, %v1412
    %v1429 = vmul.f32 %v1301, %v1413
    %v1430 = vmul.f32 %v1302, %v1414
    %v1431 = vmul.f32 %v1303, %v1415
    %v1432 = vld [vmem:[%s12] sm:$0x1]
    %v1433 = vpack.c.bf16 %v1417, %v1416
    %v1434 = vpack.c.bf16 %v1419, %v1418
    %v1435 = vpack.c.bf16 %v1421, %v1420
    %v1436 = vpack.c.bf16 %v1423, %v1422
    %v1437 = vpack.c.bf16 %v1425, %v1424
    %v1438 = vpack.c.bf16 %v1427, %v1426
    %v1439 = vpack.c.bf16 %v1429, %v1428
    %v1440 = vpack.c.bf16 %v1431, %v1430
    %v1441 = vld [vmem:[#allocation2] sm:$0x1]
    %1443 = vset.pattern.permute.xlu0 0
    %1444 = vperm.xlu0 %1443, %v1441
    %v1445 = vpop.permute.xlu0 %1444
    %v1447 = vlaneseq
    %v1448 = vshrl.u32 %v1447, 7
    %v1449 = vsub.s32 0, %v1448
    %v1450 = vrot.slane %v1445, %v1449
    %1451 = vmatprep.subr.bf16.mxu0 0
    %1452 = vmatpush1.bf16.xpose.msra.mxu0 %v1440
    %1453 = vmatprep.subr.bf16.mxu0 0
    %1454 = vmatpush1.bf16.xpose.msra.mxu0 %v1439
    %1455 = vmatprep.subr.bf16.mxu0 0
    %1456 = vmatpush1.bf16.xpose.msra.mxu0 %v1438
    %1457 = vmatprep.subr.bf16.mxu0 0
    %1458 = vmatpush1.bf16.xpose.msra.mxu0 %v1437
    %1459 = vmatprep.subr.bf16.mxu0 0
    %1460 = vmatpush1.bf16.xpose.msra.mxu0 %v1436
    %1461 = vmatprep.subr.bf16.mxu0 0
    %1462 = vmatpush1.bf16.xpose.msra.mxu0 %v1435
    %1463 = vmatprep.subr.bf16.mxu0 0
    %1464 = vmatpush1.bf16.xpose.msra.mxu0 %v1434
    %1465 = vmatprep.subr.bf16.mxu0 0
    %1466 = vmatpush1.bf16.xpose.msra.mxu0 %v1433
    %1467 = vmatprep.subr.bf16.mxu0 0
    %1468 = vmatpush2.bf16.xpose.msra.mxu0 0
    %1469 = vmatprep.subr.bf16.mxu0 0
    %1470 = vmatpush2.bf16.xpose.msra.mxu0 0
    %1471 = vmatprep.subr.bf16.mxu0 0
    %1472 = vmatpush2.bf16.xpose.msra.mxu0 0
    %1473 = vmatprep.subr.bf16.mxu0 0
    %1474 = vmatpush2.bf16.xpose.msra.mxu0 0
    %1475 = vmatprep.subr.bf16.mxu0 0
    %1476 = vmatpush2.bf16.xpose.msra.mxu0 0
    %1477 = vmatprep.subr.bf16.mxu0 0
    %1478 = vmatpush2.bf16.xpose.msra.mxu0 0
    %1479 = vmatprep.subr.bf16.mxu0 0
    %1480 = vmatpush2.bf16.xpose.msra.mxu0 0
    %1481 = vmatprep.subr.bf16.mxu0 0
    %1482 = vmatpush2.bf16.xpose.msra.mxu0 0
    %1483 = vmatprep.mubr.bf16.mxu0 0
    %1484 = vmatmul.mubr.bf16.gmra.mxu0 %v1432
    %v1485 = vpop.f32.mrf.mxu0
    %v1486 = vadd.f32 %v1450, %v1485
    %v1487 = vpop.f32.mrf.mxu0
    %v1488 = vpop.f32.mrf.mxu0
    %v1489 = vpop.f32.mrf.mxu0
    %1490 = vdwg.mxu0
    %1491 = vst [vmem:[#allocation3] sm:$0x1] %v1486
    // Predicated region
    $region58: #{tpu_custom_call.1} parent=1 // pred_check
      _
    $region59: #{tpu_custom_call.1} parent=1 // pred_check_branch
      %1493 = sbr.rel (0) target = $region61
    $region60: #{tpu_custom_call.1} parent=1 // pred_region
      %s1495 = ssub.s32 16, 16
      %1496 = vsyncadd [#allocation4], %s1495
      %s1498 = sshll.u32 [#allocation3], 4
      %s1499 = int_to_ptr.vmem [resolvable:$true] %s1498
      %1501 = dma.vmem_to_hbm [thread:$0]  %s1499, 16, %s14, [#allocation4]
    $region61: #{tpu_custom_call.1} parent=1 // pred_fallthru
      _
    // Predicated region
    $region62: #{tpu_custom_call.1} parent=1 // pred_check
      _
    $region63: #{tpu_custom_call.1} parent=1 // pred_check_branch
      %1503 = sbr.rel (0) target = $region65
    $region64: #{tpu_custom_call.1} parent=1 // pred_region
      %1504 = dma.done [#allocation4], 16
    $region65: #{tpu_custom_call.1} parent=1 // pred_fallthru
      _
    %1505 = vsyncpa [#allocation4], 1

</llo_original>
